<compile_context>
chip_gen: v5e
topology: v5e:2x2
jax: 0.10.0
libtpu: 0.0.40
codegen_flags: <defaults>
</compile_context>

<pallas_src>
import jax
import jax.numpy as jnp
from jax.experimental import pallas as pl
from jax.experimental.pallas import tpu as pltpu


def _decoder_kernel(z_ref, w1_ref, b1_ref, w2_ref, s2_ref, b2_ref, out_ref):
    """One (N tile, batch tile) grid step of the fused decoder."""
    # Hidden layer, recomputed per tile (a few MFLOP -- negligible next to the
    # W2 stream, and keeps the kernel free of cross-step state so both grid
    # axes can be marked 'parallel').
    z = z_ref[...].astype(jnp.bfloat16)
    h = jnp.dot(z, w1_ref[...], preferred_element_type=jnp.float32)
    h = jnp.maximum(h + b1_ref[...], 0.0)              # bias + ReLU in f32
    h = h.astype(jnp.bfloat16)

    # Second layer on the int8 W2 tile: int8 -> bf16 is an exact cast; the
    # per-output-channel dequant scale is folded into the f32 epilogue.
    w2 = w2_ref[...].astype(jnp.bfloat16)
    logits = jnp.dot(h, w2, preferred_element_type=jnp.float32)
    logits = logits * s2_ref[...] + b2_ref[...]
    out_ref[...] = jax.nn.sigmoid(logits).astype(out_ref.dtype)


def _vmem_limit_bytes(bm, latent, hidden, tn, out_bytes):
    """Scoped-VMEM budget: double-buffered pipeline tiles + in-kernel temporaries."""
    pipeline = 2 * (
        bm * latent * 4            # z tile (f32)
        + latent * hidden * 2      # w1 (bf16)
        + hidden * 4               # b1 (f32)
        + hidden * tn * 1          # w2 tile (int8)
        + tn * 4 + tn * 4          # w2_scale, b2 tiles (f32)
        + bm * tn * out_bytes      # output tile
    )
    temps = hidden * tn * 2 + bm * hidden * 4 + bm * tn * 4   # bf16 w2, f32 h/logits
    budget = int(1.5 * (pipeline + temps)) + (2 << 20)
    return max(16 << 20, min(budget, 48 << 20))                # v7x-safe ceiling


def decoder_forward(z, params, out_dtype=jnp.bfloat16):
    """Fused Pallas forward of Decoder2Layers.

    Args:
      z: (B, latent_dims) float32 latent codes.
      params: dict with
        w1: (latent, 512) bf16,  b1: (1, 512) f32,
        w2: (512, input_size) int8, w2_scale: (1, input_size) f32,
        b2: (1, input_size) f32.
      out_dtype: output dtype (bfloat16 by default to halve output HBM traffic;
        pass jnp.float32 for a full-precision output buffer).
    Returns:
      (B, input_size) reconstruction in [0, 1].
    """
    z = z.astype(jnp.float32)
    B, latent = z.shape
    hidden, input_size = params["w2"].shape
    assert params["w1"].shape == (latent, hidden)

    # Batch tiling: full extent for small B, 256-row tiles otherwise (fills the
    # 256-wide v6e/v7x MXU); ragged last tile is masked by Pallas.
    bm = B if B <= 256 else 256
    gb = pl.cdiv(B, bm)

    # N tiling of W2 / output: lane-dense, capped so a (512, tn) int8 tile plus
    # its bf16 copy and the output tile stay well inside v7x's 64 MiB VMEM.
    TN_CAP = 2048
    tn = input_size if input_size <= TN_CAP else TN_CAP
    gn = pl.cdiv(input_size, tn)

    out_bytes = jnp.dtype(out_dtype).itemsize
    vmem_limit = _vmem_limit_bytes(bm, latent, hidden, tn, out_bytes)

    # Advisory cost for XLA's scheduler around the custom call.
    cost = pl.CostEstimate(
        flops=2 * B * hidden * (latent * gn + input_size),
        transcendentals=B * input_size,
        bytes_accessed=(B * latent * 4 + latent * hidden * 2 + hidden * 4
                        + hidden * input_size * 1 + input_size * 8
                        + B * input_size * out_bytes),
    )

    # Grid = (N tiles, batch tiles).  W2/scale/b2 depend only on the OUTER axis
    # -> streamed once; z/w1/b1 are tiny.  No cross-step state -> both axes
    # parallel (megacore splits the W2 stream even when gb == 1).
    grid_spec = pltpu.PrefetchScalarGridSpec(
        num_scalar_prefetch=0,
        grid=(gn, gb),
        in_specs=[
            pl.BlockSpec((bm, latent), lambda n, i: (i, 0)),       # z
            pl.BlockSpec((latent, hidden), lambda n, i: (0, 0)),   # w1 (bf16)
            pl.BlockSpec((1, hidden), lambda n, i: (0, 0)),        # b1 (f32)
            pl.BlockSpec((hidden, tn), lambda n, i: (0, n)),       # w2 tile (int8)
            pl.BlockSpec((1, tn), lambda n, i: (0, n)),            # w2_scale tile (f32)
            pl.BlockSpec((1, tn), lambda n, i: (0, n)),            # b2 tile (f32)
        ],
        out_specs=pl.BlockSpec((bm, tn), lambda n, i: (i, n)),
    )

    return pl.pallas_call(
        _decoder_kernel,
        out_shape=jax.ShapeDtypeStruct((B, input_size), out_dtype),
        grid_spec=grid_spec,
        cost_estimate=cost,
        compiler_params=pltpu.CompilerParams(
            dimension_semantics=("parallel", "parallel"),
            vmem_limit_bytes=vmem_limit,
        ),
    )(z, params["w1"], params["b1"], params["w2"], params["w2_scale"], params["b2"])


def init_params(key, input_size, latent_dims, hidden=512):
    """PyTorch-style init: U(-1/sqrt(fan_in), 1/sqrt(fan_in)).

    Weights stored (in_features, out_features).  W1 kept bf16 (small); W2
    quantized to int8 with per-output-channel symmetric scales (dequantized in
    the kernel's f32 epilogue).  Biases kept f32 as (1, out_features) rows."""
    keys = jax.random.split(key, 4)

    def linear(kw, kb, fan_in, fan_out):
        bound = 1.0 / jnp.sqrt(jnp.float32(fan_in))
        w = jax.random.uniform(kw, (fan_in, fan_out), jnp.float32, -bound, bound)
        b = jax.random.uniform(kb, (1, fan_out), jnp.float32, -bound, bound)
        return w, b

    w1, b1 = linear(keys[0], keys[1], latent_dims, hidden)   # linear1
    w2, b2 = linear(keys[2], keys[3], hidden, input_size)    # linear2

    w2_scale = jnp.max(jnp.abs(w2), axis=0, keepdims=True) / 127.0   # (1, input_size)
    w2_q = jnp.clip(jnp.round(w2 / w2_scale), -127.0, 127.0).astype(jnp.int8)

    return dict(w1=w1.astype(jnp.bfloat16), b1=b1,
                w2=w2_q, w2_scale=w2_scale.astype(jnp.float32), b2=b2)


if __name__ == "__main__":
    key = jax.random.PRNGKey(0)
    k_z, k_p = jax.random.split(key, 2)

    # Small shapes consistent with the module: latent code in, flattened image out.
    B = 2
    C, H, W = 4, 16, 16
    input_size = C * H * W        # 1024
    latent_dims = 32

    z = jax.random.normal(k_z, (B, latent_dims), jnp.float32)
    params = init_params(k_p, input_size, latent_dims)

    x_hat = decoder_forward(z, params)
    jax.block_until_ready(x_hat)

    # Reference in plain JAX with identical numerics (bf16 matmul inputs, f32
    # accumulation, int8 W2 dequantized via per-channel scale in the epilogue).
    zb = z.astype(jnp.bfloat16)
    h_ref = jnp.dot(zb, params["w1"], preferred_element_type=jnp.float32) + params["b1"]
    h_ref = jnp.maximum(h_ref, 0.0)
    logits_ref = (jnp.dot(h_ref.astype(jnp.bfloat16),
                          params["w2"].astype(jnp.bfloat16),
                          preferred_element_type=jnp.float32)
                  * params["w2_scale"] + params["b2"])
    x_hat_ref = jax.nn.sigmoid(logits_ref)

    x_hat_f32 = x_hat.astype(jnp.float32)
    assert x_hat.shape == (B, input_size)
    assert x_hat.dtype == jnp.bfloat16
    assert bool(jnp.all(jnp.isfinite(x_hat_f32)))
    assert jnp.allclose(x_hat_f32, x_hat_ref, atol=5e-3, rtol=1e-2)

    print("KERNEL_OK")
</pallas_src>

<mosaic_0001>
module attributes {stable_mosaic.version = 11 : i64} {
  func.func @_decoder_kernel(%arg0: i32, %arg1: i32, %arg2: memref<2x32xf32, #tpu.memory_space<vmem>>, %arg3: memref<32x512xbf16, #tpu.memory_space<vmem>>, %arg4: memref<1x512xf32, #tpu.memory_space<vmem>>, %arg5: memref<512x1024xi8, #tpu.memory_space<vmem>>, %arg6: memref<1x1024xf32, #tpu.memory_space<vmem>>, %arg7: memref<1x1024xf32, #tpu.memory_space<vmem>>, %arg8: memref<2x1024xbf16, #tpu.memory_space<vmem>>) attributes {dimension_semantics = [#tpu.dimension_semantics<parallel>, #tpu.dimension_semantics<parallel>], iteration_bounds = array<i64: 1, 1>, scalar_prefetch = 0 : i64, scratch_operands = 0 : i64, tpu.core_type = #tpu.core_type<tc>, window_params = [{transform_indices = @transform_0, window_bounds = array<i64: 2, 32>}, {pipeline_mode = #tpu.pipeline_mode<synchronous>, transform_indices = @transform_1, window_bounds = array<i64: 32, 512>}, {pipeline_mode = #tpu.pipeline_mode<synchronous>, transform_indices = @transform_2, window_bounds = array<i64: 1, 512>}, {transform_indices = @transform_3, window_bounds = array<i64: 512, 1024>}, {transform_indices = @transform_4, window_bounds = array<i64: 1, 1024>}, {transform_indices = @transform_5, window_bounds = array<i64: 1, 1024>}, {transform_indices = @transform_6, window_bounds = array<i64: 2, 1024>}]} {
    %c0 = arith.constant 0 : index
    %c0_0 = arith.constant 0 : index
    %0 = vector.load %arg2[%c0, %c0_0] : memref<2x32xf32, #tpu.memory_space<vmem>>, vector<2x32xf32>
    %1 = arith.truncf %0 : vector<2x32xf32> to vector<2x32xbf16>
    %c0_1 = arith.constant 0 : index
    %c0_2 = arith.constant 0 : index
    %2 = vector.load %arg3[%c0_1, %c0_2] : memref<32x512xbf16, #tpu.memory_space<vmem>>, vector<32x512xbf16>
    %cst = arith.constant dense<0.000000e+00> : vector<2x512xf32>
    %3 = tpu.matmul %1, %2, %cst {dimension_numbers = #tpu.dot_dimension_numbers<[1], [0], [0], [1], [0, 0, 1, 1], [], []>} : vector<2x32xbf16>, vector<32x512xbf16>, vector<2x512xf32> -> vector<2x512xf32>
    %c0_3 = arith.constant 0 : index
    %c0_4 = arith.constant 0 : index
    %4 = vector.load %arg4[%c0_3, %c0_4] : memref<1x512xf32, #tpu.memory_space<vmem>>, vector<1x512xf32>
    %5 = vector.broadcast %4 : vector<1x512xf32> to vector<2x512xf32>
    %6 = arith.addf %3, %5 : vector<2x512xf32>
    %cst_5 = arith.constant 0.000000e+00 : f32
    %7 = vector.broadcast %cst_5 : f32 to vector<2x512xf32>
    %8 = arith.maximumf %6, %7 : vector<2x512xf32>
    %9 = arith.truncf %8 : vector<2x512xf32> to vector<2x512xbf16>
    %c0_6 = arith.constant 0 : index
    %c0_7 = arith.constant 0 : index
    %10 = vector.load %arg5[%c0_6, %c0_7] : memref<512x1024xi8, #tpu.memory_space<vmem>>, vector<512x1024xi8>
    %11 = arith.sitofp %10 : vector<512x1024xi8> to vector<512x1024xbf16>
    %cst_8 = arith.constant dense<0.000000e+00> : vector<2x1024xf32>
    %12 = tpu.matmul %9, %11, %cst_8 {dimension_numbers = #tpu.dot_dimension_numbers<[1], [0], [0], [1], [0, 0, 1, 1], [], []>} : vector<2x512xbf16>, vector<512x1024xbf16>, vector<2x1024xf32> -> vector<2x1024xf32>
    %c0_9 = arith.constant 0 : index
    %c0_10 = arith.constant 0 : index
    %13 = vector.load %arg6[%c0_9, %c0_10] : memref<1x1024xf32, #tpu.memory_space<vmem>>, vector<1x1024xf32>
    %14 = vector.broadcast %13 : vector<1x1024xf32> to vector<2x1024xf32>
    %15 = arith.mulf %12, %14 : vector<2x1024xf32>
    %c0_11 = arith.constant 0 : index
    %c0_12 = arith.constant 0 : index
    %16 = vector.load %arg7[%c0_11, %c0_12] : memref<1x1024xf32, #tpu.memory_space<vmem>>, vector<1x1024xf32>
    %17 = vector.broadcast %16 : vector<1x1024xf32> to vector<2x1024xf32>
    %18 = arith.addf %15, %17 : vector<2x1024xf32>
    %19 = arith.negf %18 : vector<2x1024xf32>
    %20 = math.exp %19 : vector<2x1024xf32>
    %cst_13 = arith.constant 1.000000e+00 : f32
    %21 = vector.broadcast %cst_13 : f32 to vector<2x1024xf32>
    %22 = arith.addf %21, %20 : vector<2x1024xf32>
    %23 = arith.divf %21, %22 : vector<2x1024xf32>
    %24 = arith.truncf %23 : vector<2x1024xf32> to vector<2x1024xbf16>
    %c0_14 = arith.constant 0 : index
    %c0_15 = arith.constant 0 : index
    %25 = vector.load %arg8[%c0_14, %c0_15] : memref<2x1024xbf16, #tpu.memory_space<vmem>>, vector<2x1024xbf16>
    tpu.vector_store %arg8[%c0_14, %c0_15], %24 {strides = array<i32>} : memref<2x1024xbf16, #tpu.memory_space<vmem>>, vector<2x1024xbf16>,
    return
  }
  func.func @transform_0(%arg0: i32, %arg1: i32) -> (i32, i32) {
    %c0_i32 = arith.constant 0 : i32
    %c0_i32_0 = arith.constant 0 : i32
    return %arg1, %c0_i32 : i32, i32
  }
  func.func @transform_1(%arg0: i32, %arg1: i32) -> (i32, i32) {
    %c0_i32 = arith.constant 0 : i32
    %c0_i32_0 = arith.constant 0 : i32
    %c0_i32_1 = arith.constant 0 : i32
    return %c0_i32, %c0_i32_0 : i32, i32
  }
  func.func @transform_2(%arg0: i32, %arg1: i32) -> (i32, i32) {
    %c0_i32 = arith.constant 0 : i32
    %c0_i32_0 = arith.constant 0 : i32
    %c0_i32_1 = arith.constant 0 : i32
    return %c0_i32, %c0_i32_0 : i32, i32
  }
  func.func @transform_3(%arg0: i32, %arg1: i32) -> (i32, i32) {
    %c0_i32 = arith.constant 0 : i32
    %c0_i32_0 = arith.constant 0 : i32
    return %c0_i32, %arg0 : i32, i32
  }
  func.func @transform_4(%arg0: i32, %arg1: i32) -> (i32, i32) {
    %c0_i32 = arith.constant 0 : i32
    %c0_i32_0 = arith.constant 0 : i32
    return %c0_i32, %arg0 : i32, i32
  }
  func.func @transform_5(%arg0: i32, %arg1: i32) -> (i32, i32) {
    %c0_i32 = arith.constant 0 : i32
    %c0_i32_0 = arith.constant 0 : i32
    return %c0_i32, %arg0 : i32, i32
  }
  func.func @transform_6(%arg0: i32, %arg1: i32) -> (i32, i32) {
    %c0_i32 = arith.constant 0 : i32
    return %arg1, %arg0 : i32, i32
  }
}

</mosaic_0001>

<llo_original>
// kernel: tpu_custom_call.1
$region0: #{tpu_custom_call.1}
  #allocation0 [shape = 'u32[]', space=smem, size = 0x4, offset = 0x4, fixed_abs, tag = 'smem constant byte address 0x4 - core index']
  #allocation1 [shape = 'u32[72,128]{1,0:T(1,128)}', space=vmem, size = 0x9000, scoped, tag = 'internal scratch']
  %s0 = inlined_call_operand.hbm [shape: f32[2,32], index: 0, kind: input, shape index: {}]
  %s1 = inlined_call_operand.hbm [shape: bf16[32,512], index: 1, kind: input, shape index: {}]
  %s2 = inlined_call_operand.hbm [shape: f32[1,512], index: 2, kind: input, shape index: {}]
  %s3 = inlined_call_operand.hbm [shape: s8[512,1024], index: 3, kind: input, shape index: {}]
  %s4 = inlined_call_operand.hbm [shape: f32[1,1024], index: 4, kind: input, shape index: {}]
  %s5 = inlined_call_operand.hbm [shape: f32[1,1024], index: 5, kind: input, shape index: {}]
  %s6 = inlined_call_operand.hbm [shape: bf16[2,1024], index: 6, kind: output, shape index: {}]
  %s7 = sld [smem:[#allocation0]]
  $region58: #{tpu_custom_call.1} parent=0
    _
  %s9 = ssub.s32 1, %s7
  %s10 = scalar_select 0, %s9, %s7
  $region1: #{tpu_custom_call.1} parent=0
    #allocation2 [shape = 'u8[1024]{0}', space=vmem, size = 0x400, scoped, tag = 'input window, operand 0, single buffered']
    #allocation3 [shape = 's32[1]{0}', space=sflag, size = 0x4, scoped, tag = 'scoped memory for tpu_custom_call.1']
    #allocation4 [shape = 's32[1]{0}', space=sflag, size = 0x4, scoped, tag = 'scoped memory for tpu_custom_call.1']
    #allocation5 [shape = 'u8[32768]{0}', space=vmem, size = 0x8000, scoped, tag = 'input window, operand 1, single buffered']
    #allocation6 [shape = 's32[1]{0}', space=sflag, size = 0x4, scoped, tag = 'scoped memory for tpu_custom_call.1']
    #allocation7 [shape = 'u8[2048]{0}', space=vmem, size = 0x800, scoped, tag = 'input window, operand 2, single buffered']
    #allocation8 [shape = 'u8[524288]{0}', space=vmem, size = 0x80000, scoped, tag = 'input window, operand 3, single buffered']
    #allocation9 [shape = 's32[1]{0}', space=sflag, size = 0x4, scoped, tag = 'scoped memory for tpu_custom_call.1']
    #allocation10 [shape = 'u8[4096]{0}', space=vmem, size = 0x1000, scoped, tag = 'input window, operand 4, single buffered']
    #allocation11 [shape = 'u8[4096]{0}', space=vmem, size = 0x1000, scoped, tag = 'input window, operand 5, single buffered']
    #allocation12 [shape = 's32[1]{0}', space=sflag, size = 0x4, scoped, tag = 'scoped memory for tpu_custom_call.1']
    #allocation13 [shape = 'u8[4096]{0}', space=vmem, size = 0x1000, scoped, tag = 'output window, operand 0, single buffered']
    %11 = vsyncpa [#allocation3], 0
    %12 = vsyncpa [#allocation6], 0
    %13 = vsyncpa [#allocation9], 0
    %14 = vsyncpa [#allocation12], 0
    %15 = vsyncpa [#allocation4], 0
    // Predicated region
    $region2: #{tpu_custom_call.1} parent=1 // pred_check
      _
    $region3: #{tpu_custom_call.1} parent=1 // pred_check_branch
      %17 = sbr.rel (0) target = $region5
    $region4: #{tpu_custom_call.1} parent=1 // pred_region
      %19 = vsyncadd [#allocation3], 0
      %s21 = sshll.u32 %s0, 4
      %s22 = int_to_ptr.hbm [resolvable:$true] %s21
      %s23 = sshll.u32 [#allocation2], 4
      %s24 = int_to_ptr.vmem [resolvable:$true] %s23
      %26 = dma.hbm_to_vmem [thread:$0]  %s22, 32, %s24, [#allocation3]
    $region5: #{tpu_custom_call.1} parent=1 // pred_fallthru
      _
    // Predicated region
    $region6: #{tpu_custom_call.1} parent=1 // pred_check
      _
    $region7: #{tpu_custom_call.1} parent=1 // pred_check_branch
      %28 = sbr.rel (0) target = $region9
    $region8: #{tpu_custom_call.1} parent=1 // pred_region
      %30 = vsyncadd [#allocation6], 0
      %s31 = sshll.u32 %s1, 4
      %s32 = int_to_ptr.hbm [resolvable:$true] %s31
      %s33 = sshll.u32 [#allocation5], 4
      %s34 = int_to_ptr.vmem [resolvable:$true] %s33
      %39 = dma.hbm_to_vmem [thread:$0]  %s32, 1024, %s34, [#allocation6], 256, 256, 16
    $region9: #{tpu_custom_call.1} parent=1 // pred_fallthru
      _
    // Predicated region
    $region10: #{tpu_custom_call.1} parent=1 // pred_check
      _
    $region11: #{tpu_custom_call.1} parent=1 // pred_check_branch
      %41 = sbr.rel (0) target = $region13
    $region12: #{tpu_custom_call.1} parent=1 // pred_region
      %43 = vsyncadd [#allocation6], 0
      %s45 = sshll.u32 %s2, 4
      %s46 = int_to_ptr.hbm [resolvable:$true] %s45
      %s47 = sshll.u32 [#allocation7], 4
      %s48 = int_to_ptr.vmem [resolvable:$true] %s47
      %50 = dma.hbm_to_vmem [thread:$0]  %s46, 64, %s48, [#allocation6]
    $region13: #{tpu_custom_call.1} parent=1 // pred_fallthru
      _
    // Predicated region
    $region14: #{tpu_custom_call.1} parent=1 // pred_check
      _
    $region15: #{tpu_custom_call.1} parent=1 // pred_check_branch
      %52 = sbr.rel (0) target = $region17
    $region16: #{tpu_custom_call.1} parent=1 // pred_region
      %54 = vsyncadd [#allocation9], 0
      %s55 = sshll.u32 %s3, 4
      %s56 = int_to_ptr.hbm [resolvable:$true] %s55
      %s57 = sshll.u32 [#allocation8], 4
      %s58 = int_to_ptr.vmem [resolvable:$true] %s57
      %63 = dma.hbm_to_vmem [thread:$0]  %s56, 16384, %s58, [#allocation9], 1024, 1024, 64
    $region17: #{tpu_custom_call.1} parent=1 // pred_fallthru
      _
    // Predicated region
    $region18: #{tpu_custom_call.1} parent=1 // pred_check
      _
    $region19: #{tpu_custom_call.1} parent=1 // pred_check_branch
      %65 = sbr.rel (0) target = $region21
    $region20: #{tpu_custom_call.1} parent=1 // pred_region
      %67 = vsyncadd [#allocation9], 0
      %s69 = sshll.u32 %s4, 4
      %s70 = int_to_ptr.hbm [resolvable:$true] %s69
      %s71 = sshll.u32 [#allocation10], 4
      %s72 = int_to_ptr.vmem [resolvable:$true] %s71
      %74 = dma.hbm_to_vmem [thread:$0]  %s70, 128, %s72, [#allocation9]
    $region21: #{tpu_custom_call.1} parent=1 // pred_fallthru
      _
    // Predicated region
    $region22: #{tpu_custom_call.1} parent=1 // pred_check
      _
    $region23: #{tpu_custom_call.1} parent=1 // pred_check_branch
      %76 = sbr.rel (0) target = $region25
    $region24: #{tpu_custom_call.1} parent=1 // pred_region
      %78 = vsyncadd [#allocation12], 0
      %s80 = sshll.u32 %s5, 4
      %s81 = int_to_ptr.hbm [resolvable:$true] %s80
      %s82 = sshll.u32 [#allocation11], 4
      %s83 = int_to_ptr.vmem [resolvable:$true] %s82
      %85 = dma.hbm_to_vmem [thread:$0]  %s81, 128, %s83, [#allocation12]
    $region25: #{tpu_custom_call.1} parent=1 // pred_fallthru
      _
    // Predicated region
    $region26: #{tpu_custom_call.1} parent=1 // pred_check
      _
    $region27: #{tpu_custom_call.1} parent=1 // pred_check_branch
      %87 = sbr.rel (0) target = $region29
    $region28: #{tpu_custom_call.1} parent=1 // pred_region
      %89 = dma.done [#allocation3], 32
    $region29: #{tpu_custom_call.1} parent=1 // pred_fallthru
      _
    // Predicated region
    $region30: #{tpu_custom_call.1} parent=1 // pred_check
      _
    $region31: #{tpu_custom_call.1} parent=1 // pred_check_branch
      %91 = sbr.rel (0) target = $region33
    $region32: #{tpu_custom_call.1} parent=1 // pred_region
      %93 = dma.done [#allocation6], 1024
    $region33: #{tpu_custom_call.1} parent=1 // pred_fallthru
      _
    // Predicated region
    $region34: #{tpu_custom_call.1} parent=1 // pred_check
      _
    $region35: #{tpu_custom_call.1} parent=1 // pred_check_branch
      %95 = sbr.rel (0) target = $region37
    $region36: #{tpu_custom_call.1} parent=1 // pred_region
      %97 = dma.done [#allocation6], 64
    $region37: #{tpu_custom_call.1} parent=1 // pred_fallthru
      _
    // Predicated region
    $region38: #{tpu_custom_call.1} parent=1 // pred_check
      _
    $region39: #{tpu_custom_call.1} parent=1 // pred_check_branch
      %99 = sbr.rel (0) target = $region41
    $region40: #{tpu_custom_call.1} parent=1 // pred_region
      %101 = dma.done [#allocation9], 16384
    $region41: #{tpu_custom_call.1} parent=1 // pred_fallthru
      _
    // Predicated region
    $region42: #{tpu_custom_call.1} parent=1 // pred_check
      _
    $region43: #{tpu_custom_call.1} parent=1 // pred_check_branch
      %103 = sbr.rel (0) target = $region45
    $region44: #{tpu_custom_call.1} parent=1 // pred_region
      %105 = dma.done [#allocation9], 128
    $region45: #{tpu_custom_call.1} parent=1 // pred_fallthru
      _
    // Predicated region
    $region46: #{tpu_custom_call.1} parent=1 // pred_check
      _
    $region47: #{tpu_custom_call.1} parent=1 // pred_check_branch
      %107 = sbr.rel (0) target = $region49
    $region48: #{tpu_custom_call.1} parent=1 // pred_region
      %109 = dma.done [#allocation12], 128
    $region49: #{tpu_custom_call.1} parent=1 // pred_fallthru
      _
    %v111 = vld [vmem:[#allocation2] sm:$0x3]
    %v112 = vpack.c.bf16 %v111, %v111
    %v113 = vld [vmem:[#allocation5] sm:$0xff]
    %v114 = vld [vmem:[#allocation5 + $0x8] sm:$0xff]
    %v115 = vld [vmem:[#allocation5 + $0x10] sm:$0xff]
    %v116 = vld [vmem:[#allocation5 + $0x18] sm:$0xff]
    %v117 = vld [vmem:[#allocation5 + $0x20] sm:$0xff]
    %v118 = vld [vmem:[#allocation5 + $0x28] sm:$0xff]
    %v119 = vld [vmem:[#allocation5 + $0x30] sm:$0xff]
    %v120 = vld [vmem:[#allocation5 + $0x38] sm:$0xff]
    %v121 = vld [vmem:[#allocation7] sm:$0xf]
    %v123 = vperm.slane %v121, 0
    %v124 = vperm.slane %v121, 1
    %v125 = vperm.slane %v121, 2
    %v126 = vperm.slane %v121, 3
    %v139 = vunpack.c.l.b16 %v113
    %v140 = vunpack.c.h.b16 %v113
    %v141 = vunpack.c.l.b16 %v114
    %v142 = vunpack.c.h.b16 %v114
    %v143 = vunpack.c.l.b16 %v115
    %v144 = vunpack.c.h.b16 %v115
    %v145 = vunpack.c.l.b16 %v116
    %v146 = vunpack.c.h.b16 %v116
    %v147 = vunpack.c.l.b16 %v117
    %v148 = vunpack.c.h.b16 %v117
    %v149 = vunpack.c.l.b16 %v118
    %v150 = vunpack.c.h.b16 %v118
    %v151 = vunpack.c.l.b16 %v119
    %v152 = vunpack.c.h.b16 %v119
    %v153 = vunpack.c.l.b16 %v120
    %v154 = vunpack.c.h.b16 %v120
    %v155 = vpack.c.b16 %v143, %v139
    %v156 = vpack.c.b16 %v144, %v140
    %v157 = vpack.c.b16 %v145, %v141
    %v158 = vpack.c.b16 %v146, %v142
    %v159 = vpack.c.b16 %v151, %v147
    %v160 = vpack.c.b16 %v152, %v148
    %v161 = vpack.c.b16 %v153, %v149
    %v162 = vpack.c.b16 %v154, %v150
    %vm171 = vcmask 261120
    %v173 = vsel %vm171, %v112, 0
    %175 = vmatpush.bf16.msra.mxu0 0
    %176 = vmatpush.bf16.msra.mxu0 0
    %177 = vmatpush.bf16.msra.mxu0 0
    %178 = vmatpush.bf16.msra.mxu0 0
    %179 = vmatpush.bf16.msra.mxu0 0
    %180 = vmatpush.bf16.msra.mxu0 0
    %181 = vmatpush.bf16.msra.mxu0 %v159
    %182 = vmatpush.bf16.msra.mxu0 %v155
    %183 = vmatmul.bf16.gmra.mxu0 %v173
    %v184 = vpop.f32.mrf.mxu0
    %v185 = vadd.f32 %v123, %v184
    %v186 = vpop.f32.mrf.mxu0
    %187 = vdwg.mxu0
    %188 = vmatpush.bf16.msra.mxu0 0
    %189 = vmatpush.bf16.msra.mxu0 0
    %190 = vmatpush.bf16.msra.mxu0 0
    %191 = vmatpush.bf16.msra.mxu0 0
    %192 = vmatpush.bf16.msra.mxu0 0
    %193 = vmatpush.bf16.msra.mxu0 0
    %194 = vmatpush.bf16.msra.mxu0 %v160
    %195 = vmatpush.bf16.msra.mxu0 %v156
    %196 = vmatmul.bf16.gmra.mxu0 %v173
    %v197 = vpop.f32.mrf.mxu0
    %v198 = vadd.f32 %v124, %v197
    %v199 = vpop.f32.mrf.mxu0
    %200 = vdwg.mxu0
    %201 = vmatpush.bf16.msra.mxu0 0
    %202 = vmatpush.bf16.msra.mxu0 0
    %203 = vmatpush.bf16.msra.mxu0 0
    %204 = vmatpush.bf16.msra.mxu0 0
    %205 = vmatpush.bf16.msra.mxu0 0
    %206 = vmatpush.bf16.msra.mxu0 0
    %207 = vmatpush.bf16.msra.mxu0 %v161
    %208 = vmatpush.bf16.msra.mxu0 %v157
    %209 = vmatmul.bf16.gmra.mxu0 %v173
    %v210 = vpop.f32.mrf.mxu0
    %v211 = vadd.f32 %v125, %v210
    %v212 = vpop.f32.mrf.mxu0
    %213 = vdwg.mxu0
    %214 = vmatpush.bf16.msra.mxu0 0
    %215 = vmatpush.bf16.msra.mxu0 0
    %216 = vmatpush.bf16.msra.mxu0 0
    %217 = vmatpush.bf16.msra.mxu0 0
    %218 = vmatpush.bf16.msra.mxu0 0
    %219 = vmatpush.bf16.msra.mxu0 0
    %220 = vmatpush.bf16.msra.mxu0 %v162
    %221 = vmatpush.bf16.msra.mxu0 %v158
    %222 = vmatmul.bf16.gmra.mxu0 %v173
    %v223 = vpop.f32.mrf.mxu0
    %v224 = vadd.f32 %v126, %v223
    %v225 = vpop.f32.mrf.mxu0
    %226 = vdwg.mxu0
    %v227 = vmax.f32 %v185, 0.0
    %v228 = vmax.f32 %v198, 0.0
    %v229 = vmax.f32 %v211, 0.0
    %v230 = vmax.f32 %v224, 0.0
    %v231 = vpack.c.bf16 %v227, %v227
    %v232 = vpack.c.bf16 %v228, %v228
    %v233 = vpack.c.bf16 %v229, %v229
    %v234 = vpack.c.bf16 %v230, %v230
    %v235 = vld [vmem:[#allocation8] sm:$0xff]
    %v236 = vld [vmem:[#allocation8 + $0x8] sm:$0xff]
    %v237 = vld [vmem:[#allocation8 + $0x10] sm:$0xff]
    %v238 = vld [vmem:[#allocation8 + $0x18] sm:$0xff]
    %v239 = vld [vmem:[#allocation8 + $0x20] sm:$0xff]
    %v240 = vld [vmem:[#allocation8 + $0x28] sm:$0xff]
    %v241 = vld [vmem:[#allocation8 + $0x30] sm:$0xff]
    %v242 = vld [vmem:[#allocation8 + $0x38] sm:$0xff]
    %v243 = vld [vmem:[#allocation8 + $0x40] sm:$0xff]
    %v244 = vld [vmem:[#allocation8 + $0x48] sm:$0xff]
    %v245 = vld [vmem:[#allocation8 + $0x50] sm:$0xff]
    %v246 = vld [vmem:[#allocation8 + $0x58] sm:$0xff]
    %v247 = vld [vmem:[#allocation8 + $0x60] sm:$0xff]
    %v248 = vld [vmem:[#allocation8 + $0x68] sm:$0xff]
    %v249 = vld [vmem:[#allocation8 + $0x70] sm:$0xff]
    %v250 = vld [vmem:[#allocation8 + $0x78] sm:$0xff]
    %v251 = vld [vmem:[#allocation8 + $0x80] sm:$0xff]
    %v252 = vld [vmem:[#allocation8 + $0x88] sm:$0xff]
    %v253 = vld [vmem:[#allocation8 + $0x90] sm:$0xff]
    %v254 = vld [vmem:[#allocation8 + $0x98] sm:$0xff]
    %v255 = vld [vmem:[#allocation8 + $0xa0] sm:$0xff]
    %v256 = vld [vmem:[#allocation8 + $0xa8] sm:$0xff]
    %v257 = vld [vmem:[#allocation8 + $0xb0] sm:$0xff]
    %v258 = vld [vmem:[#allocation8 + $0xb8] sm:$0xff]
    %v259 = vld [vmem:[#allocation8 + $0xc0] sm:$0xff]
    %v260 = vld [vmem:[#allocation8 + $0xc8] sm:$0xff]
    %v261 = vld [vmem:[#allocation8 + $0xd0] sm:$0xff]
    %v262 = vld [vmem:[#allocation8 + $0xd8] sm:$0xff]
    %v263 = vld [vmem:[#allocation8 + $0xe0] sm:$0xff]
    %v264 = vld [vmem:[#allocation8 + $0xe8] sm:$0xff]
    %v265 = vld [vmem:[#allocation8 + $0xf0] sm:$0xff]
    %v266 = vld [vmem:[#allocation8 + $0xf8] sm:$0xff]
    %v267 = vld [vmem:[#allocation8 + $0x100] sm:$0xff]
    %v268 = vld [vmem:[#allocation8 + $0x108] sm:$0xff]
    %v269 = vld [vmem:[#allocation8 + $0x110] sm:$0xff]
    %v270 = vld [vmem:[#allocation8 + $0x118] sm:$0xff]
    %v271 = vld [vmem:[#allocation8 + $0x120] sm:$0xff]
    %v272 = vld [vmem:[#allocation8 + $0x128] sm:$0xff]
    %v273 = vld [vmem:[#allocation8 + $0x130] sm:$0xff]
    %v274 = vld [vmem:[#allocation8 + $0x138] sm:$0xff]
    %v275 = vld [vmem:[#allocation8 + $0x140] sm:$0xff]
    %v276 = vld [vmem:[#allocation8 + $0x148] sm:$0xff]
    %v277 = vld [vmem:[#allocation8 + $0x150] sm:$0xff]
    %v278 = vld [vmem:[#allocation8 + $0x158] sm:$0xff]
    %v279 = vld [vmem:[#allocation8 + $0x160] sm:$0xff]
    %v280 = vld [vmem:[#allocation8 + $0x168] sm:$0xff]
    %v281 = vld [vmem:[#allocation8 + $0x170] sm:$0xff]
    %v282 = vld [vmem:[#allocation8 + $0x178] sm:$0xff]
    %v283 = vld [vmem:[#allocation8 + $0x180] sm:$0xff]
    %v284 = vld [vmem:[#allocation8 + $0x188] sm:$0xff]
    %v285 = vld [vmem:[#allocation8 + $0x190] sm:$0xff]
    %v286 = vld [vmem:[#allocation8 + $0x198] sm:$0xff]
    %v287 = vld [vmem:[#allocation8 + $0x1a0] sm:$0xff]
    %v288 = vld [vmem:[#allocation8 + $0x1a8] sm:$0xff]
    %v289 = vld [vmem:[#allocation8 + $0x1b0] sm:$0xff]
    %v290 = vld [vmem:[#allocation8 + $0x1b8] sm:$0xff]
    %v291 = vld [vmem:[#allocation8 + $0x1c0] sm:$0xff]
    %v292 = vld [vmem:[#allocation8 + $0x1c8] sm:$0xff]
    %v293 = vld [vmem:[#allocation8 + $0x1d0] sm:$0xff]
    %v294 = vld [vmem:[#allocation8 + $0x1d8] sm:$0xff]
    %v295 = vld [vmem:[#allocation8 + $0x1e0] sm:$0xff]
    %v296 = vld [vmem:[#allocation8 + $0x1e8] sm:$0xff]
    %v297 = vld [vmem:[#allocation8 + $0x1f0] sm:$0xff]
    %v298 = vld [vmem:[#allocation8 + $0x1f8] sm:$0xff]
    %v299 = vld [vmem:[#allocation8 + $0x200] sm:$0xff]
    %v300 = vld [vmem:[#allocation8 + $0x208] sm:$0xff]
    %v301 = vld [vmem:[#allocation8 + $0x210] sm:$0xff]
    %v302 = vld [vmem:[#allocation8 + $0x218] sm:$0xff]
    %v303 = vld [vmem:[#allocation8 + $0x220] sm:$0xff]
    %v304 = vld [vmem:[#allocation8 + $0x228] sm:$0xff]
    %v305 = vld [vmem:[#allocation8 + $0x230] sm:$0xff]
    %v306 = vld [vmem:[#allocation8 + $0x238] sm:$0xff]
    %v307 = vld [vmem:[#allocation8 + $0x240] sm:$0xff]
    %v308 = vld [vmem:[#allocation8 + $0x248] sm:$0xff]
    %v309 = vld [vmem:[#allocation8 + $0x250] sm:$0xff]
    %v310 = vld [vmem:[#allocation8 + $0x258] sm:$0xff]
    %v311 = vld [vmem:[#allocation8 + $0x260] sm:$0xff]
    %v312 = vld [vmem:[#allocation8 + $0x268] sm:$0xff]
    %v313 = vld [vmem:[#allocation8 + $0x270] sm:$0xff]
    %v314 = vld [vmem:[#allocation8 + $0x278] sm:$0xff]
    %v315 = vld [vmem:[#allocation8 + $0x280] sm:$0xff]
    %v316 = vld [vmem:[#allocation8 + $0x288] sm:$0xff]
    %v317 = vld [vmem:[#allocation8 + $0x290] sm:$0xff]
    %v318 = vld [vmem:[#allocation8 + $0x298] sm:$0xff]
    %v319 = vld [vmem:[#allocation8 + $0x2a0] sm:$0xff]
    %v320 = vld [vmem:[#allocation8 + $0x2a8] sm:$0xff]
    %v321 = vld [vmem:[#allocation8 + $0x2b0] sm:$0xff]
    %v322 = vld [vmem:[#allocation8 + $0x2b8] sm:$0xff]
    %v323 = vld [vmem:[#allocation8 + $0x2c0] sm:$0xff]
    %v324 = vld [vmem:[#allocation8 + $0x2c8] sm:$0xff]
    %v325 = vld [vmem:[#allocation8 + $0x2d0] sm:$0xff]
    %v326 = vld [vmem:[#allocation8 + $0x2d8] sm:$0xff]
    %v327 = vld [vmem:[#allocation8 + $0x2e0] sm:$0xff]
    %v328 = vld [vmem:[#allocation8 + $0x2e8] sm:$0xff]
    %v329 = vld [vmem:[#allocation8 + $0x2f0] sm:$0xff]
    %v330 = vld [vmem:[#allocation8 + $0x2f8] sm:$0xff]
    %v331 = vld [vmem:[#allocation8 + $0x300] sm:$0xff]
    %v332 = vld [vmem:[#allocation8 + $0x308] sm:$0xff]
    %v333 = vld [vmem:[#allocation8 + $0x310] sm:$0xff]
    %v334 = vld [vmem:[#allocation8 + $0x318] sm:$0xff]
    %v335 = vld [vmem:[#allocation8 + $0x320] sm:$0xff]
    %v336 = vld [vmem:[#allocation8 + $0x328] sm:$0xff]
    %v337 = vld [vmem:[#allocation8 + $0x330] sm:$0xff]
    %v338 = vld [vmem:[#allocation8 + $0x338] sm:$0xff]
    %v339 = vld [vmem:[#allocation8 + $0x340] sm:$0xff]
    %v340 = vld [vmem:[#allocation8 + $0x348] sm:$0xff]
    %v341 = vld [vmem:[#allocation8 + $0x350] sm:$0xff]
    %v342 = vld [vmem:[#allocation8 + $0x358] sm:$0xff]
    %v343 = vld [vmem:[#allocation8 + $0x360] sm:$0xff]
    %v344 = vld [vmem:[#allocation8 + $0x368] sm:$0xff]
    %v345 = vld [vmem:[#allocation8 + $0x370] sm:$0xff]
    %v346 = vld [vmem:[#allocation8 + $0x378] sm:$0xff]
    %v347 = vld [vmem:[#allocation8 + $0x380] sm:$0xff]
    %v348 = vld [vmem:[#allocation8 + $0x388] sm:$0xff]
    %v349 = vld [vmem:[#allocation8 + $0x390] sm:$0xff]
    %v350 = vld [vmem:[#allocation8 + $0x398] sm:$0xff]
    %v351 = vld [vmem:[#allocation8 + $0x3a0] sm:$0xff]
    %v352 = vld [vmem:[#allocation8 + $0x3a8] sm:$0xff]
    %v353 = vld [vmem:[#allocation8 + $0x3b0] sm:$0xff]
    %v354 = vld [vmem:[#allocation8 + $0x3b8] sm:$0xff]
    %v355 = vld [vmem:[#allocation8 + $0x3c0] sm:$0xff]
    %v356 = vld [vmem:[#allocation8 + $0x3c8] sm:$0xff]
    %v357 = vld [vmem:[#allocation8 + $0x3d0] sm:$0xff]
    %v358 = vld [vmem:[#allocation8 + $0x3d8] sm:$0xff]
    %v359 = vld [vmem:[#allocation8 + $0x3e0] sm:$0xff]
    %v360 = vld [vmem:[#allocation8 + $0x3e8] sm:$0xff]
    %v361 = vld [vmem:[#allocation8 + $0x3f0] sm:$0xff]
    %v362 = vld [vmem:[#allocation8 + $0x3f8] sm:$0xff]
    %v363 = vunpack.c.0.s8 %v235
    %v364 = vunpack.c.0.s8 %v236
    %v365 = vunpack.c.0.s8 %v237
    %v366 = vunpack.c.0.s8 %v238
    %v367 = vunpack.c.0.s8 %v239
    %v368 = vunpack.c.0.s8 %v240
    %v369 = vunpack.c.0.s8 %v241
    %v370 = vunpack.c.0.s8 %v242
    %v371 = vunpack.c.1.s8 %v235
    %v372 = vunpack.c.1.s8 %v236
    %v373 = vunpack.c.1.s8 %v237
    %v374 = vunpack.c.1.s8 %v238
    %v375 = vunpack.c.1.s8 %v239
    %v376 = vunpack.c.1.s8 %v240
    %v377 = vunpack.c.1.s8 %v241
    %v378 = vunpack.c.1.s8 %v242
    %v379 = vunpack.c.2.s8 %v235
    %v380 = vunpack.c.2.s8 %v236
    %v381 = vunpack.c.2.s8 %v237
    %v382 = vunpack.c.2.s8 %v238
    %v383 = vunpack.c.2.s8 %v239
    %v384 = vunpack.c.2.s8 %v240
    %v385 = vunpack.c.2.s8 %v241
    %v386 = vunpack.c.2.s8 %v242
    %v387 = vunpack.c.3.s8 %v235
    %v388 = vunpack.c.3.s8 %v236
    %v389 = vunpack.c.3.s8 %v237
    %v390 = vunpack.c.3.s8 %v238
    %v391 = vunpack.c.3.s8 %v239
    %v392 = vunpack.c.3.s8 %v240
    %v393 = vunpack.c.3.s8 %v241
    %v394 = vunpack.c.3.s8 %v242
    %v395 = vunpack.c.0.s8 %v243
    %v396 = vunpack.c.0.s8 %v244
    %v397 = vunpack.c.0.s8 %v245
    %v398 = vunpack.c.0.s8 %v246
    %v399 = vunpack.c.0.s8 %v247
    %v400 = vunpack.c.0.s8 %v248
    %v401 = vunpack.c.0.s8 %v249
    %v402 = vunpack.c.0.s8 %v250
    %v403 = vunpack.c.1.s8 %v243
    %v404 = vunpack.c.1.s8 %v244
    %v405 = vunpack.c.1.s8 %v245
    %v406 = vunpack.c.1.s8 %v246
    %v407 = vunpack.c.1.s8 %v247
    %v408 = vunpack.c.1.s8 %v248
    %v409 = vunpack.c.1.s8 %v249
    %v410 = vunpack.c.1.s8 %v250
    %v411 = vunpack.c.2.s8 %v243
    %v412 = vunpack.c.2.s8 %v244
    %v413 = vunpack.c.2.s8 %v245
    %v414 = vunpack.c.2.s8 %v246
    %v415 = vunpack.c.2.s8 %v247
    %v416 = vunpack.c.2.s8 %v248
    %v417 = vunpack.c.2.s8 %v249
    %v418 = vunpack.c.2.s8 %v250
    %v419 = vunpack.c.3.s8 %v243
    %v420 = vunpack.c.3.s8 %v244
    %v421 = vunpack.c.3.s8 %v245
    %v422 = vunpack.c.3.s8 %v246
    %v423 = vunpack.c.3.s8 %v247
    %v424 = vunpack.c.3.s8 %v248
    %v425 = vunpack.c.3.s8 %v249
    %v426 = vunpack.c.3.s8 %v250
    %v427 = vunpack.c.0.s8 %v251
    %v428 = vunpack.c.0.s8 %v252
    %v429 = vunpack.c.0.s8 %v253
    %v430 = vunpack.c.0.s8 %v254
    %v431 = vunpack.c.0.s8 %v255
    %v432 = vunpack.c.0.s8 %v256
    %v433 = vunpack.c.0.s8 %v257
    %v434 = vunpack.c.0.s8 %v258
    %v435 = vunpack.c.1.s8 %v251
    %v436 = vunpack.c.1.s8 %v252
    %v437 = vunpack.c.1.s8 %v253
    %v438 = vunpack.c.1.s8 %v254
    %v439 = vunpack.c.1.s8 %v255
    %v440 = vunpack.c.1.s8 %v256
    %v441 = vunpack.c.1.s8 %v257
    %v442 = vunpack.c.1.s8 %v258
    %v443 = vunpack.c.2.s8 %v251
    %v444 = vunpack.c.2.s8 %v252
    %v445 = vunpack.c.2.s8 %v253
    %v446 = vunpack.c.2.s8 %v254
    %v447 = vunpack.c.2.s8 %v255
    %v448 = vunpack.c.2.s8 %v256
    %v449 = vunpack.c.2.s8 %v257
    %v450 = vunpack.c.2.s8 %v258
    %v451 = vunpack.c.3.s8 %v251
    %v452 = vunpack.c.3.s8 %v252
    %v453 = vunpack.c.3.s8 %v253
    %v454 = vunpack.c.3.s8 %v254
    %v455 = vunpack.c.3.s8 %v255
    %v456 = vunpack.c.3.s8 %v256
    %v457 = vunpack.c.3.s8 %v257
    %v458 = vunpack.c.3.s8 %v258
    %v459 = vunpack.c.0.s8 %v259
    %v460 = vunpack.c.0.s8 %v260
    %v461 = vunpack.c.0.s8 %v261
    %v462 = vunpack.c.0.s8 %v262
    %v463 = vunpack.c.0.s8 %v263
    %v464 = vunpack.c.0.s8 %v264
    %v465 = vunpack.c.0.s8 %v265
    %v466 = vunpack.c.0.s8 %v266
    %v467 = vunpack.c.1.s8 %v259
    %v468 = vunpack.c.1.s8 %v260
    %v469 = vunpack.c.1.s8 %v261
    %v470 = vunpack.c.1.s8 %v262
    %v471 = vunpack.c.1.s8 %v263
    %v472 = vunpack.c.1.s8 %v264
    %v473 = vunpack.c.1.s8 %v265
    %v474 = vunpack.c.1.s8 %v266
    %v475 = vunpack.c.2.s8 %v259
    %v476 = vunpack.c.2.s8 %v260
    %v477 = vunpack.c.2.s8 %v261
    %v478 = vunpack.c.2.s8 %v262
    %v479 = vunpack.c.2.s8 %v263
    %v480 = vunpack.c.2.s8 %v264
    %v481 = vunpack.c.2.s8 %v265
    %v482 = vunpack.c.2.s8 %v266
    %v483 = vunpack.c.3.s8 %v259
    %v484 = vunpack.c.3.s8 %v260
    %v485 = vunpack.c.3.s8 %v261
    %v486 = vunpack.c.3.s8 %v262
    %v487 = vunpack.c.3.s8 %v263
    %v488 = vunpack.c.3.s8 %v264
    %v489 = vunpack.c.3.s8 %v265
    %v490 = vunpack.c.3.s8 %v266
    %v491 = vunpack.c.0.s8 %v267
    %v492 = vunpack.c.0.s8 %v268
    %v493 = vunpack.c.0.s8 %v269
    %v494 = vunpack.c.0.s8 %v270
    %v495 = vunpack.c.0.s8 %v271
    %v496 = vunpack.c.0.s8 %v272
    %v497 = vunpack.c.0.s8 %v273
    %v498 = vunpack.c.0.s8 %v274
    %v499 = vunpack.c.1.s8 %v267
    %v500 = vunpack.c.1.s8 %v268
    %v501 = vunpack.c.1.s8 %v269
    %v502 = vunpack.c.1.s8 %v270
    %v503 = vunpack.c.1.s8 %v271
    %v504 = vunpack.c.1.s8 %v272
    %v505 = vunpack.c.1.s8 %v273
    %v506 = vunpack.c.1.s8 %v274
    %v507 = vunpack.c.2.s8 %v267
    %v508 = vunpack.c.2.s8 %v268
    %v509 = vunpack.c.2.s8 %v269
    %v510 = vunpack.c.2.s8 %v270
    %v511 = vunpack.c.2.s8 %v271
    %v512 = vunpack.c.2.s8 %v272
    %v513 = vunpack.c.2.s8 %v273
    %v514 = vunpack.c.2.s8 %v274
    %v515 = vunpack.c.3.s8 %v267
    %v516 = vunpack.c.3.s8 %v268
    %v517 = vunpack.c.3.s8 %v269
    %v518 = vunpack.c.3.s8 %v270
    %v519 = vunpack.c.3.s8 %v271
    %v520 = vunpack.c.3.s8 %v272
    %v521 = vunpack.c.3.s8 %v273
    %v522 = vunpack.c.3.s8 %v274
    %v523 = vunpack.c.0.s8 %v275
    %v524 = vunpack.c.0.s8 %v276
    %v525 = vunpack.c.0.s8 %v277
    %v526 = vunpack.c.0.s8 %v278
    %v527 = vunpack.c.0.s8 %v279
    %v528 = vunpack.c.0.s8 %v280
    %v529 = vunpack.c.0.s8 %v281
    %v530 = vunpack.c.0.s8 %v282
    %v531 = vunpack.c.1.s8 %v275
    %v532 = vunpack.c.1.s8 %v276
    %v533 = vunpack.c.1.s8 %v277
    %v534 = vunpack.c.1.s8 %v278
    %v535 = vunpack.c.1.s8 %v279
    %v536 = vunpack.c.1.s8 %v280
    %v537 = vunpack.c.1.s8 %v281
    %v538 = vunpack.c.1.s8 %v282
    %v539 = vunpack.c.2.s8 %v275
    %v540 = vunpack.c.2.s8 %v276
    %v541 = vunpack.c.2.s8 %v277
    %v542 = vunpack.c.2.s8 %v278
    %v543 = vunpack.c.2.s8 %v279
    %v544 = vunpack.c.2.s8 %v280
    %v545 = vunpack.c.2.s8 %v281
    %v546 = vunpack.c.2.s8 %v282
    %v547 = vunpack.c.3.s8 %v275
    %v548 = vunpack.c.3.s8 %v276
    %v549 = vunpack.c.3.s8 %v277
    %v550 = vunpack.c.3.s8 %v278
    %v551 = vunpack.c.3.s8 %v279
    %v552 = vunpack.c.3.s8 %v280
    %v553 = vunpack.c.3.s8 %v281
    %v554 = vunpack.c.3.s8 %v282
    %v555 = vunpack.c.0.s8 %v283
    %v556 = vunpack.c.0.s8 %v284
    %v557 = vunpack.c.0.s8 %v285
    %v558 = vunpack.c.0.s8 %v286
    %v559 = vunpack.c.0.s8 %v287
    %v560 = vunpack.c.0.s8 %v288
    %v561 = vunpack.c.0.s8 %v289
    %v562 = vunpack.c.0.s8 %v290
    %v563 = vunpack.c.1.s8 %v283
    %v564 = vunpack.c.1.s8 %v284
    %v565 = vunpack.c.1.s8 %v285
    %v566 = vunpack.c.1.s8 %v286
    %v567 = vunpack.c.1.s8 %v287
    %v568 = vunpack.c.1.s8 %v288
    %v569 = vunpack.c.1.s8 %v289
    %v570 = vunpack.c.1.s8 %v290
    %v571 = vunpack.c.2.s8 %v283
    %v572 = vunpack.c.2.s8 %v284
    %v573 = vunpack.c.2.s8 %v285
    %v574 = vunpack.c.2.s8 %v286
    %v575 = vunpack.c.2.s8 %v287
    %v576 = vunpack.c.2.s8 %v288
    %v577 = vunpack.c.2.s8 %v289
    %v578 = vunpack.c.2.s8 %v290
    %v579 = vunpack.c.3.s8 %v283
    %v580 = vunpack.c.3.s8 %v284
    %v581 = vunpack.c.3.s8 %v285
    %v582 = vunpack.c.3.s8 %v286
    %v583 = vunpack.c.3.s8 %v287
    %v584 = vunpack.c.3.s8 %v288
    %v585 = vunpack.c.3.s8 %v289
    %v586 = vunpack.c.3.s8 %v290
    %v587 = vunpack.c.0.s8 %v291
    %v588 = vunpack.c.0.s8 %v292
    %v589 = vunpack.c.0.s8 %v293
    %v590 = vunpack.c.0.s8 %v294
    %v591 = vunpack.c.0.s8 %v295
    %v592 = vunpack.c.0.s8 %v296
    %v593 = vunpack.c.0.s8 %v297
    %v594 = vunpack.c.0.s8 %v298
    %v595 = vunpack.c.1.s8 %v291
    %v596 = vunpack.c.1.s8 %v292
    %v597 = vunpack.c.1.s8 %v293
    %v598 = vunpack.c.1.s8 %v294
    %v599 = vunpack.c.1.s8 %v295
    %v600 = vunpack.c.1.s8 %v296
    %v601 = vunpack.c.1.s8 %v297
    %v602 = vunpack.c.1.s8 %v298
    %v603 = vunpack.c.2.s8 %v291
    %v604 = vunpack.c.2.s8 %v292
    %v605 = vunpack.c.2.s8 %v293
    %v606 = vunpack.c.2.s8 %v294
    %v607 = vunpack.c.2.s8 %v295
    %v608 = vunpack.c.2.s8 %v296
    %v609 = vunpack.c.2.s8 %v297
    %v610 = vunpack.c.2.s8 %v298
    %v611 = vunpack.c.3.s8 %v291
    %v612 = vunpack.c.3.s8 %v292
    %v613 = vunpack.c.3.s8 %v293
    %v614 = vunpack.c.3.s8 %v294
    %v615 = vunpack.c.3.s8 %v295
    %v616 = vunpack.c.3.s8 %v296
    %v617 = vunpack.c.3.s8 %v297
    %v618 = vunpack.c.3.s8 %v298
    %v619 = vunpack.c.0.s8 %v299
    %v620 = vunpack.c.0.s8 %v300
    %v621 = vunpack.c.0.s8 %v301
    %v622 = vunpack.c.0.s8 %v302
    %v623 = vunpack.c.0.s8 %v303
    %v624 = vunpack.c.0.s8 %v304
    %v625 = vunpack.c.0.s8 %v305
    %v626 = vunpack.c.0.s8 %v306
    %v627 = vunpack.c.1.s8 %v299
    %v628 = vunpack.c.1.s8 %v300
    %v629 = vunpack.c.1.s8 %v301
    %v630 = vunpack.c.1.s8 %v302
    %v631 = vunpack.c.1.s8 %v303
    %v632 = vunpack.c.1.s8 %v304
    %v633 = vunpack.c.1.s8 %v305
    %v634 = vunpack.c.1.s8 %v306
    %v635 = vunpack.c.2.s8 %v299
    %v636 = vunpack.c.2.s8 %v300
    %v637 = vunpack.c.2.s8 %v301
    %v638 = vunpack.c.2.s8 %v302
    %v639 = vunpack.c.2.s8 %v303
    %v640 = vunpack.c.2.s8 %v304
    %v641 = vunpack.c.2.s8 %v305
    %v642 = vunpack.c.2.s8 %v306
    %v643 = vunpack.c.3.s8 %v299
    %v644 = vunpack.c.3.s8 %v300
    %v645 = vunpack.c.3.s8 %v301
    %v646 = vunpack.c.3.s8 %v302
    %v647 = vunpack.c.3.s8 %v303
    %v648 = vunpack.c.3.s8 %v304
    %v649 = vunpack.c.3.s8 %v305
    %v650 = vunpack.c.3.s8 %v306
    %v651 = vunpack.c.0.s8 %v307
    %v652 = vunpack.c.0.s8 %v308
    %v653 = vunpack.c.0.s8 %v309
    %v654 = vunpack.c.0.s8 %v310
    %v655 = vunpack.c.0.s8 %v311
    %v656 = vunpack.c.0.s8 %v312
    %v657 = vunpack.c.0.s8 %v313
    %v658 = vunpack.c.0.s8 %v314
    %v659 = vunpack.c.1.s8 %v307
    %v660 = vunpack.c.1.s8 %v308
    %v661 = vunpack.c.1.s8 %v309
    %v662 = vunpack.c.1.s8 %v310
    %v663 = vunpack.c.1.s8 %v311
    %v664 = vunpack.c.1.s8 %v312
    %v665 = vunpack.c.1.s8 %v313
    %v666 = vunpack.c.1.s8 %v314
    %v667 = vunpack.c.2.s8 %v307
    %v668 = vunpack.c.2.s8 %v308
    %v669 = vunpack.c.2.s8 %v309
    %v670 = vunpack.c.2.s8 %v310
    %v671 = vunpack.c.2.s8 %v311
    %v672 = vunpack.c.2.s8 %v312
    %v673 = vunpack.c.2.s8 %v313
    %v674 = vunpack.c.2.s8 %v314
    %v675 = vunpack.c.3.s8 %v307
    %v676 = vunpack.c.3.s8 %v308
    %v677 = vunpack.c.3.s8 %v309
    %v678 = vunpack.c.3.s8 %v310
    %v679 = vunpack.c.3.s8 %v311
    %v680 = vunpack.c.3.s8 %v312
    %v681 = vunpack.c.3.s8 %v313
    %v682 = vunpack.c.3.s8 %v314
    %v683 = vunpack.c.0.s8 %v315
    %v684 = vunpack.c.0.s8 %v316
    %v685 = vunpack.c.0.s8 %v317
    %v686 = vunpack.c.0.s8 %v318
    %v687 = vunpack.c.0.s8 %v319
    %v688 = vunpack.c.0.s8 %v320
    %v689 = vunpack.c.0.s8 %v321
    %v690 = vunpack.c.0.s8 %v322
    %v691 = vunpack.c.1.s8 %v315
    %v692 = vunpack.c.1.s8 %v316
    %v693 = vunpack.c.1.s8 %v317
    %v694 = vunpack.c.1.s8 %v318
    %v695 = vunpack.c.1.s8 %v319
    %v696 = vunpack.c.1.s8 %v320
    %v697 = vunpack.c.1.s8 %v321
    %v698 = vunpack.c.1.s8 %v322
    %v699 = vunpack.c.2.s8 %v315
    %v700 = vunpack.c.2.s8 %v316
    %v701 = vunpack.c.2.s8 %v317
    %v702 = vunpack.c.2.s8 %v318
    %v703 = vunpack.c.2.s8 %v319
    %v704 = vunpack.c.2.s8 %v320
    %v705 = vunpack.c.2.s8 %v321
    %v706 = vunpack.c.2.s8 %v322
    %v707 = vunpack.c.3.s8 %v315
    %v708 = vunpack.c.3.s8 %v316
    %v709 = vunpack.c.3.s8 %v317
    %v710 = vunpack.c.3.s8 %v318
    %v711 = vunpack.c.3.s8 %v319
    %v712 = vunpack.c.3.s8 %v320
    %v713 = vunpack.c.3.s8 %v321
    %v714 = vunpack.c.3.s8 %v322
    %v715 = vunpack.c.0.s8 %v323
    %v716 = vunpack.c.0.s8 %v324
    %v717 = vunpack.c.0.s8 %v325
    %v718 = vunpack.c.0.s8 %v326
    %v719 = vunpack.c.0.s8 %v327
    %v720 = vunpack.c.0.s8 %v328
    %v721 = vunpack.c.0.s8 %v329
    %v722 = vunpack.c.0.s8 %v330
    %v723 = vunpack.c.1.s8 %v323
    %v724 = vunpack.c.1.s8 %v324
    %v725 = vunpack.c.1.s8 %v325
    %v726 = vunpack.c.1.s8 %v326
    %v727 = vunpack.c.1.s8 %v327
    %v728 = vunpack.c.1.s8 %v328
    %v729 = vunpack.c.1.s8 %v329
    %v730 = vunpack.c.1.s8 %v330
    %v731 = vunpack.c.2.s8 %v323
    %v732 = vunpack.c.2.s8 %v324
    %v733 = vunpack.c.2.s8 %v325
    %v734 = vunpack.c.2.s8 %v326
    %v735 = vunpack.c.2.s8 %v327
    %v736 = vunpack.c.2.s8 %v328
    %v737 = vunpack.c.2.s8 %v329
    %v738 = vunpack.c.2.s8 %v330
    %v739 = vunpack.c.3.s8 %v323
    %v740 = vunpack.c.3.s8 %v324
    %v741 = vunpack.c.3.s8 %v325
    %v742 = vunpack.c.3.s8 %v326
    %v743 = vunpack.c.3.s8 %v327
    %v744 = vunpack.c.3.s8 %v328
    %v745 = vunpack.c.3.s8 %v329
    %v746 = vunpack.c.3.s8 %v330
    %v747 = vunpack.c.0.s8 %v331
    %v748 = vunpack.c.0.s8 %v332
    %v749 = vunpack.c.0.s8 %v333
    %v750 = vunpack.c.0.s8 %v334
    %v751 = vunpack.c.0.s8 %v335
    %v752 = vunpack.c.0.s8 %v336
    %v753 = vunpack.c.0.s8 %v337
    %v754 = vunpack.c.0.s8 %v338
    %v755 = vunpack.c.1.s8 %v331
    %v756 = vunpack.c.1.s8 %v332
    %v757 = vunpack.c.1.s8 %v333
    %v758 = vunpack.c.1.s8 %v334
    %v759 = vunpack.c.1.s8 %v335
    %v760 = vunpack.c.1.s8 %v336
    %v761 = vunpack.c.1.s8 %v337
    %v762 = vunpack.c.1.s8 %v338
    %v763 = vunpack.c.2.s8 %v331
    %v764 = vunpack.c.2.s8 %v332
    %v765 = vunpack.c.2.s8 %v333
    %v766 = vunpack.c.2.s8 %v334
    %v767 = vunpack.c.2.s8 %v335
    %v768 = vunpack.c.2.s8 %v336
    %v769 = vunpack.c.2.s8 %v337
    %v770 = vunpack.c.2.s8 %v338
    %v771 = vunpack.c.3.s8 %v331
    %v772 = vunpack.c.3.s8 %v332
    %v773 = vunpack.c.3.s8 %v333
    %v774 = vunpack.c.3.s8 %v334
    %v775 = vunpack.c.3.s8 %v335
    %v776 = vunpack.c.3.s8 %v336
    %v777 = vunpack.c.3.s8 %v337
    %v778 = vunpack.c.3.s8 %v338
    %v779 = vunpack.c.0.s8 %v339
    %v780 = vunpack.c.0.s8 %v340
    %v781 = vunpack.c.0.s8 %v341
    %v782 = vunpack.c.0.s8 %v342
    %v783 = vunpack.c.0.s8 %v343
    %v784 = vunpack.c.0.s8 %v344
    %v785 = vunpack.c.0.s8 %v345
    %v786 = vunpack.c.0.s8 %v346
    %v787 = vunpack.c.1.s8 %v339
    %v788 = vunpack.c.1.s8 %v340
    %v789 = vunpack.c.1.s8 %v341
    %v790 = vunpack.c.1.s8 %v342
    %v791 = vunpack.c.1.s8 %v343
    %v792 = vunpack.c.1.s8 %v344
    %v793 = vunpack.c.1.s8 %v345
    %v794 = vunpack.c.1.s8 %v346
    %v795 = vunpack.c.2.s8 %v339
    %v796 = vunpack.c.2.s8 %v340
    %v797 = vunpack.c.2.s8 %v341
    %v798 = vunpack.c.2.s8 %v342
    %v799 = vunpack.c.2.s8 %v343
    %v800 = vunpack.c.2.s8 %v344
    %v801 = vunpack.c.2.s8 %v345
    %v802 = vunpack.c.2.s8 %v346
    %v803 = vunpack.c.3.s8 %v339
    %v804 = vunpack.c.3.s8 %v340
    %v805 = vunpack.c.3.s8 %v341
    %v806 = vunpack.c.3.s8 %v342
    %v807 = vunpack.c.3.s8 %v343
    %v808 = vunpack.c.3.s8 %v344
    %v809 = vunpack.c.3.s8 %v345
    %v810 = vunpack.c.3.s8 %v346
    %v811 = vunpack.c.0.s8 %v347
    %v812 = vunpack.c.0.s8 %v348
    %v813 = vunpack.c.0.s8 %v349
    %v814 = vunpack.c.0.s8 %v350
    %v815 = vunpack.c.0.s8 %v351
    %v816 = vunpack.c.0.s8 %v352
    %v817 = vunpack.c.0.s8 %v353
    %v818 = vunpack.c.0.s8 %v354
    %v819 = vunpack.c.1.s8 %v347
    %v820 = vunpack.c.1.s8 %v348
    %v821 = vunpack.c.1.s8 %v349
    %v822 = vunpack.c.1.s8 %v350
    %v823 = vunpack.c.1.s8 %v351
    %v824 = vunpack.c.1.s8 %v352
    %v825 = vunpack.c.1.s8 %v353
    %v826 = vunpack.c.1.s8 %v354
    %v827 = vunpack.c.2.s8 %v347
    %v828 = vunpack.c.2.s8 %v348
    %v829 = vunpack.c.2.s8 %v349
    %v830 = vunpack.c.2.s8 %v350
    %v831 = vunpack.c.2.s8 %v351
    %v832 = vunpack.c.2.s8 %v352
    %v833 = vunpack.c.2.s8 %v353
    %v834 = vunpack.c.2.s8 %v354
    %v835 = vunpack.c.3.s8 %v347
    %v836 = vunpack.c.3.s8 %v348
    %v837 = vunpack.c.3.s8 %v349
    %v838 = vunpack.c.3.s8 %v350
    %v839 = vunpack.c.3.s8 %v351
    %v840 = vunpack.c.3.s8 %v352
    %v841 = vunpack.c.3.s8 %v353
    %v842 = vunpack.c.3.s8 %v354
    %v843 = vunpack.c.0.s8 %v355
    %v844 = vunpack.c.0.s8 %v356
    %v845 = vunpack.c.0.s8 %v357
    %v846 = vunpack.c.0.s8 %v358
    %v847 = vunpack.c.0.s8 %v359
    %v848 = vunpack.c.0.s8 %v360
    %v849 = vunpack.c.0.s8 %v361
    %v850 = vunpack.c.0.s8 %v362
    %v851 = vunpack.c.1.s8 %v355
    %v852 = vunpack.c.1.s8 %v356
    %v853 = vunpack.c.1.s8 %v357
    %v854 = vunpack.c.1.s8 %v358
    %v855 = vunpack.c.1.s8 %v359
    %v856 = vunpack.c.1.s8 %v360
    %v857 = vunpack.c.1.s8 %v361
    %v858 = vunpack.c.1.s8 %v362
    %v859 = vunpack.c.2.s8 %v355
    %v860 = vunpack.c.2.s8 %v356
    %v861 = vunpack.c.2.s8 %v357
    %v862 = vunpack.c.2.s8 %v358
    %v863 = vunpack.c.2.s8 %v359
    %v864 = vunpack.c.2.s8 %v360
    %v865 = vunpack.c.2.s8 %v361
    %v866 = vunpack.c.2.s8 %v362
    %v867 = vunpack.c.3.s8 %v355
    %v868 = vunpack.c.3.s8 %v356
    %v869 = vunpack.c.3.s8 %v357
    %v870 = vunpack.c.3.s8 %v358
    %v871 = vunpack.c.3.s8 %v359
    %v872 = vunpack.c.3.s8 %v360
    %v873 = vunpack.c.3.s8 %v361
    %v874 = vunpack.c.3.s8 %v362
    %v875 = vcvt.s32.f32 %v363
    %v876 = vcvt.s32.f32 %v364
    %v877 = vcvt.s32.f32 %v365
    %v878 = vcvt.s32.f32 %v366
    %v879 = vcvt.s32.f32 %v367
    %v880 = vcvt.s32.f32 %v368
    %v881 = vcvt.s32.f32 %v369
    %v882 = vcvt.s32.f32 %v370
    %v883 = vcvt.s32.f32 %v371
    %v884 = vcvt.s32.f32 %v372
    %v885 = vcvt.s32.f32 %v373
    %v886 = vcvt.s32.f32 %v374
    %v887 = vcvt.s32.f32 %v375
    %v888 = vcvt.s32.f32 %v376
    %v889 = vcvt.s32.f32 %v377
    %v890 = vcvt.s32.f32 %v378
    %v891 = vcvt.s32.f32 %v379
    %v892 = vcvt.s32.f32 %v380
    %v893 = vcvt.s32.f32 %v381
    %v894 = vcvt.s32.f32 %v382
    %v895 = vcvt.s32.f32 %v383
    %v896 = vcvt.s32.f32 %v384
    %v897 = vcvt.s32.f32 %v385
    %v898 = vcvt.s32.f32 %v386
    %v899 = vcvt.s32.f32 %v387
    %v900 = vcvt.s32.f32 %v388
    %v901 = vcvt.s32.f32 %v389
    %v902 = vcvt.s32.f32 %v390
    %v903 = vcvt.s32.f32 %v391
    %v904 = vcvt.s32.f32 %v392
    %v905 = vcvt.s32.f32 %v393
    %v906 = vcvt.s32.f32 %v394
    %v907 = vcvt.s32.f32 %v395
    %v908 = vcvt.s32.f32 %v396
    %v909 = vcvt.s32.f32 %v397
    %v910 = vcvt.s32.f32 %v398
    %v911 = vcvt.s32.f32 %v399
    %v912 = vcvt.s32.f32 %v400
    %v913 = vcvt.s32.f32 %v401
    %v914 = vcvt.s32.f32 %v402
    %v915 = vcvt.s32.f32 %v403
    %v916 = vcvt.s32.f32 %v404
    %v917 = vcvt.s32.f32 %v405
    %v918 = vcvt.s32.f32 %v406
    %v919 = vcvt.s32.f32 %v407
    %v920 = vcvt.s32.f32 %v408
    %v921 = vcvt.s32.f32 %v409
    %v922 = vcvt.s32.f32 %v410
    %v923 = vcvt.s32.f32 %v411
    %v924 = vcvt.s32.f32 %v412
    %v925 = vcvt.s32.f32 %v413
    %v926 = vcvt.s32.f32 %v414
    %v927 = vcvt.s32.f32 %v415
    %v928 = vcvt.s32.f32 %v416
    %v929 = vcvt.s32.f32 %v417
    %v930 = vcvt.s32.f32 %v418
    %v931 = vcvt.s32.f32 %v419
    %v932 = vcvt.s32.f32 %v420
    %v933 = vcvt.s32.f32 %v421
    %v934 = vcvt.s32.f32 %v422
    %v935 = vcvt.s32.f32 %v423
    %v936 = vcvt.s32.f32 %v424
    %v937 = vcvt.s32.f32 %v425
    %v938 = vcvt.s32.f32 %v426
    %v939 = vcvt.s32.f32 %v427
    %v940 = vcvt.s32.f32 %v428
    %v941 = vcvt.s32.f32 %v429
    %v942 = vcvt.s32.f32 %v430
    %v943 = vcvt.s32.f32 %v431
    %v944 = vcvt.s32.f32 %v432
    %v945 = vcvt.s32.f32 %v433
    %v946 = vcvt.s32.f32 %v434
    %v947 = vcvt.s32.f32 %v435
    %v948 = vcvt.s32.f32 %v436
    %v949 = vcvt.s32.f32 %v437
    %v950 = vcvt.s32.f32 %v438
    %v951 = vcvt.s32.f32 %v439
    %v952 = vcvt.s32.f32 %v440
    %v953 = vcvt.s32.f32 %v441
    %v954 = vcvt.s32.f32 %v442
    %v955 = vcvt.s32.f32 %v443
    %v956 = vcvt.s32.f32 %v444
    %v957 = vcvt.s32.f32 %v445
    %v958 = vcvt.s32.f32 %v446
    %v959 = vcvt.s32.f32 %v447
    %v960 = vcvt.s32.f32 %v448
    %v961 = vcvt.s32.f32 %v449
    %v962 = vcvt.s32.f32 %v450
    %v963 = vcvt.s32.f32 %v451
    %v964 = vcvt.s32.f32 %v452
    %v965 = vcvt.s32.f32 %v453
    %v966 = vcvt.s32.f32 %v454
    %v967 = vcvt.s32.f32 %v455
    %v968 = vcvt.s32.f32 %v456
    %v969 = vcvt.s32.f32 %v457
    %v970 = vcvt.s32.f32 %v458
    %v971 = vcvt.s32.f32 %v459
    %v972 = vcvt.s32.f32 %v460
    %v973 = vcvt.s32.f32 %v461
    %v974 = vcvt.s32.f32 %v462
    %v975 = vcvt.s32.f32 %v463
    %v976 = vcvt.s32.f32 %v464
    %v977 = vcvt.s32.f32 %v465
    %v978 = vcvt.s32.f32 %v466
    %v979 = vcvt.s32.f32 %v467
    %v980 = vcvt.s32.f32 %v468
    %v981 = vcvt.s32.f32 %v469
    %v982 = vcvt.s32.f32 %v470
    %v983 = vcvt.s32.f32 %v471
    %v984 = vcvt.s32.f32 %v472
    %v985 = vcvt.s32.f32 %v473
    %v986 = vcvt.s32.f32 %v474
    %v987 = vcvt.s32.f32 %v475
    %v988 = vcvt.s32.f32 %v476
    %v989 = vcvt.s32.f32 %v477
    %v990 = vcvt.s32.f32 %v478
    %v991 = vcvt.s32.f32 %v479
    %v992 = vcvt.s32.f32 %v480
    %v993 = vcvt.s32.f32 %v481
    %v994 = vcvt.s32.f32 %v482
    %v995 = vcvt.s32.f32 %v483
    %v996 = vcvt.s32.f32 %v484
    %v997 = vcvt.s32.f32 %v485
    %v998 = vcvt.s32.f32 %v486
    %v999 = vcvt.s32.f32 %v487
    %v1000 = vcvt.s32.f32 %v488
    %v1001 = vcvt.s32.f32 %v489
    %v1002 = vcvt.s32.f32 %v490
    %v1003 = vcvt.s32.f32 %v491
    %v1004 = vcvt.s32.f32 %v492
    %v1005 = vcvt.s32.f32 %v493
    %v1006 = vcvt.s32.f32 %v494
    %v1007 = vcvt.s32.f32 %v495
    %v1008 = vcvt.s32.f32 %v496
    %v1009 = vcvt.s32.f32 %v497
    %v1010 = vcvt.s32.f32 %v498
    %v1011 = vcvt.s32.f32 %v499
    %v1012 = vcvt.s32.f32 %v500
    %v1013 = vcvt.s32.f32 %v501
    %v1014 = vcvt.s32.f32 %v502
    %v1015 = vcvt.s32.f32 %v503
    %v1016 = vcvt.s32.f32 %v504
    %v1017 = vcvt.s32.f32 %v505
    %v1018 = vcvt.s32.f32 %v506
    %v1019 = vcvt.s32.f32 %v507
    %v1020 = vcvt.s32.f32 %v508
    %v1021 = vcvt.s32.f32 %v509
    %v1022 = vcvt.s32.f32 %v510
    %v1023 = vcvt.s32.f32 %v511
    %v1024 = vcvt.s32.f32 %v512
    %v1025 = vcvt.s32.f32 %v513
    %v1026 = vcvt.s32.f32 %v514
    %v1027 = vcvt.s32.f32 %v515
    %v1028 = vcvt.s32.f32 %v516
    %v1029 = vcvt.s32.f32 %v517
    %v1030 = vcvt.s32.f32 %v518
    %v1031 = vcvt.s32.f32 %v519
    %v1032 = vcvt.s32.f32 %v520
    %v1033 = vcvt.s32.f32 %v521
    %v1034 = vcvt.s32.f32 %v522
    %v1035 = vcvt.s32.f32 %v523
    %v1036 = vcvt.s32.f32 %v524
    %v1037 = vcvt.s32.f32 %v525
    %v1038 = vcvt.s32.f32 %v526
    %v1039 = vcvt.s32.f32 %v527
    %v1040 = vcvt.s32.f32 %v528
    %v1041 = vcvt.s32.f32 %v529
    %v1042 = vcvt.s32.f32 %v530
    %v1043 = vcvt.s32.f32 %v531
    %v1044 = vcvt.s32.f32 %v532
    %v1045 = vcvt.s32.f32 %v533
    %v1046 = vcvt.s32.f32 %v534
    %v1047 = vcvt.s32.f32 %v535
    %v1048 = vcvt.s32.f32 %v536
    %v1049 = vcvt.s32.f32 %v537
    %v1050 = vcvt.s32.f32 %v538
    %v1051 = vcvt.s32.f32 %v539
    %v1052 = vcvt.s32.f32 %v540
    %v1053 = vcvt.s32.f32 %v541
    %v1054 = vcvt.s32.f32 %v542
    %v1055 = vcvt.s32.f32 %v543
    %v1056 = vcvt.s32.f32 %v544
    %v1057 = vcvt.s32.f32 %v545
    %v1058 = vcvt.s32.f32 %v546
    %v1059 = vcvt.s32.f32 %v547
    %v1060 = vcvt.s32.f32 %v548
    %v1061 = vcvt.s32.f32 %v549
    %v1062 = vcvt.s32.f32 %v550
    %v1063 = vcvt.s32.f32 %v551
    %v1064 = vcvt.s32.f32 %v552
    %v1065 = vcvt.s32.f32 %v553
    %v1066 = vcvt.s32.f32 %v554
    %v1067 = vcvt.s32.f32 %v555
    %v1068 = vcvt.s32.f32 %v556
    %v1069 = vcvt.s32.f32 %v557
    %v1070 = vcvt.s32.f32 %v558
    %v1071 = vcvt.s32.f32 %v559
    %v1072 = vcvt.s32.f32 %v560
    %v1073 = vcvt.s32.f32 %v561
    %v1074 = vcvt.s32.f32 %v562
    %v1075 = vcvt.s32.f32 %v563
    %v1076 = vcvt.s32.f32 %v564
    %v1077 = vcvt.s32.f32 %v565
    %v1078 = vcvt.s32.f32 %v566
    %v1079 = vcvt.s32.f32 %v567
    %v1080 = vcvt.s32.f32 %v568
    %v1081 = vcvt.s32.f32 %v569
    %v1082 = vcvt.s32.f32 %v570
    %v1083 = vcvt.s32.f32 %v571
    %v1084 = vcvt.s32.f32 %v572
    %v1085 = vcvt.s32.f32 %v573
    %v1086 = vcvt.s32.f32 %v574
    %v1087 = vcvt.s32.f32 %v575
    %v1088 = vcvt.s32.f32 %v576
    %v1089 = vcvt.s32.f32 %v577
    %v1090 = vcvt.s32.f32 %v578
    %v1091 = vcvt.s32.f32 %v579
    %v1092 = vcvt.s32.f32 %v580
    %v1093 = vcvt.s32.f32 %v581
    %v1094 = vcvt.s32.f32 %v582
    %v1095 = vcvt.s32.f32 %v583
    %v1096 = vcvt.s32.f32 %v584
    %v1097 = vcvt.s32.f32 %v585
    %v1098 = vcvt.s32.f32 %v586
    %v1099 = vcvt.s32.f32 %v587
    %v1100 = vcvt.s32.f32 %v588
    %v1101 = vcvt.s32.f32 %v589
    %v1102 = vcvt.s32.f32 %v590
    %v1103 = vcvt.s32.f32 %v591
    %v1104 = vcvt.s32.f32 %v592
    %v1105 = vcvt.s32.f32 %v593
    %v1106 = vcvt.s32.f32 %v594
    %v1107 = vcvt.s32.f32 %v595
    %v1108 = vcvt.s32.f32 %v596
    %v1109 = vcvt.s32.f32 %v597
    %v1110 = vcvt.s32.f32 %v598
    %v1111 = vcvt.s32.f32 %v599
    %v1112 = vcvt.s32.f32 %v600
    %v1113 = vcvt.s32.f32 %v601
    %v1114 = vcvt.s32.f32 %v602
    %v1115 = vcvt.s32.f32 %v603
    %v1116 = vcvt.s32.f32 %v604
    %v1117 = vcvt.s32.f32 %v605
    %v1118 = vcvt.s32.f32 %v606
    %v1119 = vcvt.s32.f32 %v607
    %v1120 = vcvt.s32.f32 %v608
    %v1121 = vcvt.s32.f32 %v609
    %v1122 = vcvt.s32.f32 %v610
    %v1123 = vcvt.s32.f32 %v611
    %v1124 = vcvt.s32.f32 %v612
    %v1125 = vcvt.s32.f32 %v613
    %v1126 = vcvt.s32.f32 %v614
    %v1127 = vcvt.s32.f32 %v615
    %v1128 = vcvt.s32.f32 %v616
    %v1129 = vcvt.s32.f32 %v617
    %v1130 = vcvt.s32.f32 %v618
    %v1131 = vcvt.s32.f32 %v619
    %v1132 = vcvt.s32.f32 %v620
    %v1133 = vcvt.s32.f32 %v621
    %v1134 = vcvt.s32.f32 %v622
    %v1135 = vcvt.s32.f32 %v623
    %v1136 = vcvt.s32.f32 %v624
    %v1137 = vcvt.s32.f32 %v625
    %v1138 = vcvt.s32.f32 %v626
    %v1139 = vcvt.s32.f32 %v627
    %v1140 = vcvt.s32.f32 %v628
    %v1141 = vcvt.s32.f32 %v629
    %v1142 = vcvt.s32.f32 %v630
    %v1143 = vcvt.s32.f32 %v631
    %v1144 = vcvt.s32.f32 %v632
    %v1145 = vcvt.s32.f32 %v633
    %v1146 = vcvt.s32.f32 %v634
    %v1147 = vcvt.s32.f32 %v635
    %v1148 = vcvt.s32.f32 %v636
    %v1149 = vcvt.s32.f32 %v637
    %v1150 = vcvt.s32.f32 %v638
    %v1151 = vcvt.s32.f32 %v639
    %v1152 = vcvt.s32.f32 %v640
    %v1153 = vcvt.s32.f32 %v641
    %v1154 = vcvt.s32.f32 %v642
    %v1155 = vcvt.s32.f32 %v643
    %v1156 = vcvt.s32.f32 %v644
    %v1157 = vcvt.s32.f32 %v645
    %v1158 = vcvt.s32.f32 %v646
    %v1159 = vcvt.s32.f32 %v647
    %v1160 = vcvt.s32.f32 %v648
    %v1161 = vcvt.s32.f32 %v649
    %v1162 = vcvt.s32.f32 %v650
    %v1163 = vcvt.s32.f32 %v651
    %v1164 = vcvt.s32.f32 %v652
    %v1165 = vcvt.s32.f32 %v653
    %v1166 = vcvt.s32.f32 %v654
    %v1167 = vcvt.s32.f32 %v655
    %v1168 = vcvt.s32.f32 %v656
    %v1169 = vcvt.s32.f32 %v657
    %v1170 = vcvt.s32.f32 %v658
    %v1171 = vcvt.s32.f32 %v659
    %v1172 = vcvt.s32.f32 %v660
    %v1173 = vcvt.s32.f32 %v661
    %v1174 = vcvt.s32.f32 %v662
    %v1175 = vcvt.s32.f32 %v663
    %v1176 = vcvt.s32.f32 %v664
    %v1177 = vcvt.s32.f32 %v665
    %v1178 = vcvt.s32.f32 %v666
    %v1179 = vcvt.s32.f32 %v667
    %v1180 = vcvt.s32.f32 %v668
    %v1181 = vcvt.s32.f32 %v669
    %v1182 = vcvt.s32.f32 %v670
    %v1183 = vcvt.s32.f32 %v671
    %v1184 = vcvt.s32.f32 %v672
    %v1185 = vcvt.s32.f32 %v673
    %v1186 = vcvt.s32.f32 %v674
    %v1187 = vcvt.s32.f32 %v675
    %v1188 = vcvt.s32.f32 %v676
    %v1189 = vcvt.s32.f32 %v677
    %v1190 = vcvt.s32.f32 %v678
    %v1191 = vcvt.s32.f32 %v679
    %v1192 = vcvt.s32.f32 %v680
    %v1193 = vcvt.s32.f32 %v681
    %v1194 = vcvt.s32.f32 %v682
    %v1195 = vcvt.s32.f32 %v683
    %v1196 = vcvt.s32.f32 %v684
    %v1197 = vcvt.s32.f32 %v685
    %v1198 = vcvt.s32.f32 %v686
    %v1199 = vcvt.s32.f32 %v687
    %v1200 = vcvt.s32.f32 %v688
    %v1201 = vcvt.s32.f32 %v689
    %v1202 = vcvt.s32.f32 %v690
    %v1203 = vcvt.s32.f32 %v691
    %v1204 = vcvt.s32.f32 %v692
    %v1205 = vcvt.s32.f32 %v693
    %v1206 = vcvt.s32.f32 %v694
    %v1207 = vcvt.s32.f32 %v695
    %v1208 = vcvt.s32.f32 %v696
    %v1209 = vcvt.s32.f32 %v697
    %v1210 = vcvt.s32.f32 %v698
    %v1211 = vcvt.s32.f32 %v699
    %v1212 = vcvt.s32.f32 %v700
    %v1213 = vcvt.s32.f32 %v701
    %v1214 = vcvt.s32.f32 %v702
    %v1215 = vcvt.s32.f32 %v703
    %v1216 = vcvt.s32.f32 %v704
    %v1217 = vcvt.s32.f32 %v705
    %v1218 = vcvt.s32.f32 %v706
    %v1219 = vcvt.s32.f32 %v707
    %v1220 = vcvt.s32.f32 %v708
    %v1221 = vcvt.s32.f32 %v709
    %v1222 = vcvt.s32.f32 %v710
    %v1223 = vcvt.s32.f32 %v711
    %v1224 = vcvt.s32.f32 %v712
    %v1225 = vcvt.s32.f32 %v713
    %v1226 = vcvt.s32.f32 %v714
    %v1227 = vcvt.s32.f32 %v715
    %v1228 = vcvt.s32.f32 %v716
    %v1229 = vcvt.s32.f32 %v717
    %v1230 = vcvt.s32.f32 %v718
    %v1231 = vcvt.s32.f32 %v719
    %v1232 = vcvt.s32.f32 %v720
    %v1233 = vcvt.s32.f32 %v721
    %v1234 = vcvt.s32.f32 %v722
    %v1235 = vcvt.s32.f32 %v723
    %v1236 = vcvt.s32.f32 %v724
    %v1237 = vcvt.s32.f32 %v725
    %v1238 = vcvt.s32.f32 %v726
    %v1239 = vcvt.s32.f32 %v727
    %v1240 = vcvt.s32.f32 %v728
    %v1241 = vcvt.s32.f32 %v729
    %v1242 = vcvt.s32.f32 %v730
    %v1243 = vcvt.s32.f32 %v731
    %v1244 = vcvt.s32.f32 %v732
    %v1245 = vcvt.s32.f32 %v733
    %v1246 = vcvt.s32.f32 %v734
    %v1247 = vcvt.s32.f32 %v735
    %v1248 = vcvt.s32.f32 %v736
    %v1249 = vcvt.s32.f32 %v737
    %v1250 = vcvt.s32.f32 %v738
    %v1251 = vcvt.s32.f32 %v739
    %v1252 = vcvt.s32.f32 %v740
    %v1253 = vcvt.s32.f32 %v741
    %v1254 = vcvt.s32.f32 %v742
    %v1255 = vcvt.s32.f32 %v743
    %v1256 = vcvt.s32.f32 %v744
    %v1257 = vcvt.s32.f32 %v745
    %v1258 = vcvt.s32.f32 %v746
    %v1259 = vcvt.s32.f32 %v747
    %v1260 = vcvt.s32.f32 %v748
    %v1261 = vcvt.s32.f32 %v749
    %v1262 = vcvt.s32.f32 %v750
    %v1263 = vcvt.s32.f32 %v751
    %v1264 = vcvt.s32.f32 %v752
    %v1265 = vcvt.s32.f32 %v753
    %v1266 = vcvt.s32.f32 %v754
    %v1267 = vcvt.s32.f32 %v755
    %v1268 = vcvt.s32.f32 %v756
    %v1269 = vcvt.s32.f32 %v757
    %v1270 = vcvt.s32.f32 %v758
    %v1271 = vcvt.s32.f32 %v759
    %v1272 = vcvt.s32.f32 %v760
    %v1273 = vcvt.s32.f32 %v761
    %v1274 = vcvt.s32.f32 %v762
    %v1275 = vcvt.s32.f32 %v763
    %v1276 = vcvt.s32.f32 %v764
    %v1277 = vcvt.s32.f32 %v765
    %v1278 = vcvt.s32.f32 %v766
    %v1279 = vcvt.s32.f32 %v767
    %v1280 = vcvt.s32.f32 %v768
    %v1281 = vcvt.s32.f32 %v769
    %v1282 = vcvt.s32.f32 %v770
    %v1283 = vcvt.s32.f32 %v771
    %v1284 = vcvt.s32.f32 %v772
    %v1285 = vcvt.s32.f32 %v773
    %v1286 = vcvt.s32.f32 %v774
    %v1287 = vcvt.s32.f32 %v775
    %v1288 = vcvt.s32.f32 %v776
    %v1289 = vcvt.s32.f32 %v777
    %v1290 = vcvt.s32.f32 %v778
    %v1291 = vcvt.s32.f32 %v779
    %v1292 = vcvt.s32.f32 %v780
    %v1293 = vcvt.s32.f32 %v781
    %v1294 = vcvt.s32.f32 %v782
    %v1295 = vcvt.s32.f32 %v783
    %v1296 = vcvt.s32.f32 %v784
    %v1297 = vcvt.s32.f32 %v785
    %v1298 = vcvt.s32.f32 %v786
    %v1299 = vcvt.s32.f32 %v787
    %v1300 = vcvt.s32.f32 %v788
    %v1301 = vcvt.s32.f32 %v789
    %v1302 = vcvt.s32.f32 %v790
    %v1303 = vcvt.s32.f32 %v791
    %v1304 = vcvt.s32.f32 %v792
    %v1305 = vcvt.s32.f32 %v793
    %v1306 = vcvt.s32.f32 %v794
    %v1307 = vcvt.s32.f32 %v795
    %v1308 = vcvt.s32.f32 %v796
    %v1309 = vcvt.s32.f32 %v797
    %v1310 = vcvt.s32.f32 %v798
    %v1311 = vcvt.s32.f32 %v799
    %v1312 = vcvt.s32.f32 %v800
    %v1313 = vcvt.s32.f32 %v801
    %v1314 = vcvt.s32.f32 %v802
    %v1315 = vcvt.s32.f32 %v803
    %v1316 = vcvt.s32.f32 %v804
    %v1317 = vcvt.s32.f32 %v805
    %v1318 = vcvt.s32.f32 %v806
    %v1319 = vcvt.s32.f32 %v807
    %v1320 = vcvt.s32.f32 %v808
    %v1321 = vcvt.s32.f32 %v809
    %v1322 = vcvt.s32.f32 %v810
    %v1323 = vcvt.s32.f32 %v811
    %v1324 = vcvt.s32.f32 %v812
    %v1325 = vcvt.s32.f32 %v813
    %v1326 = vcvt.s32.f32 %v814
    %v1327 = vcvt.s32.f32 %v815
    %v1328 = vcvt.s32.f32 %v816
    %v1329 = vcvt.s32.f32 %v817
    %v1330 = vcvt.s32.f32 %v818
    %v1331 = vcvt.s32.f32 %v819
    %v1332 = vcvt.s32.f32 %v820
    %v1333 = vcvt.s32.f32 %v821
    %v1334 = vcvt.s32.f32 %v822
    %v1335 = vcvt.s32.f32 %v823
    %v1336 = vcvt.s32.f32 %v824
    %v1337 = vcvt.s32.f32 %v825
    %v1338 = vcvt.s32.f32 %v826
    %v1339 = vcvt.s32.f32 %v827
    %v1340 = vcvt.s32.f32 %v828
    %v1341 = vcvt.s32.f32 %v829
    %v1342 = vcvt.s32.f32 %v830
    %v1343 = vcvt.s32.f32 %v831
    %v1344 = vcvt.s32.f32 %v832
    %v1345 = vcvt.s32.f32 %v833
    %v1346 = vcvt.s32.f32 %v834
    %v1347 = vcvt.s32.f32 %v835
    %v1348 = vcvt.s32.f32 %v836
    %v1349 = vcvt.s32.f32 %v837
    %v1350 = vcvt.s32.f32 %v838
    %v1351 = vcvt.s32.f32 %v839
    %v1352 = vcvt.s32.f32 %v840
    %v1353 = vcvt.s32.f32 %v841
    %v1354 = vcvt.s32.f32 %v842
    %v1355 = vcvt.s32.f32 %v843
    %v1356 = vcvt.s32.f32 %v844
    %v1357 = vcvt.s32.f32 %v845
    %v1358 = vcvt.s32.f32 %v846
    %v1359 = vcvt.s32.f32 %v847
    %v1360 = vcvt.s32.f32 %v848
    %v1361 = vcvt.s32.f32 %v849
    %v1362 = vcvt.s32.f32 %v850
    %v1363 = vcvt.s32.f32 %v851
    %v1364 = vcvt.s32.f32 %v852
    %v1365 = vcvt.s32.f32 %v853
    %v1366 = vcvt.s32.f32 %v854
    %v1367 = vcvt.s32.f32 %v855
    %v1368 = vcvt.s32.f32 %v856
    %v1369 = vcvt.s32.f32 %v857
    %v1370 = vcvt.s32.f32 %v858
    %v1371 = vcvt.s32.f32 %v859
    %v1372 = vcvt.s32.f32 %v860
    %v1373 = vcvt.s32.f32 %v861
    %v1374 = vcvt.s32.f32 %v862
    %v1375 = vcvt.s32.f32 %v863
    %v1376 = vcvt.s32.f32 %v864
    %v1377 = vcvt.s32.f32 %v865
    %v1378 = vcvt.s32.f32 %v866
    %v1379 = vcvt.s32.f32 %v867
    %v1380 = vcvt.s32.f32 %v868
    %v1381 = vcvt.s32.f32 %v869
    %v1382 = vcvt.s32.f32 %v870
    %v1383 = vcvt.s32.f32 %v871
    %v1384 = vcvt.s32.f32 %v872
    %v1385 = vcvt.s32.f32 %v873
    %v1386 = vcvt.s32.f32 %v874
    %v1387 = vpack.c.bf16 %v883, %v875
    %v1388 = vpack.c.bf16 %v884, %v876
    %v1389 = vpack.c.bf16 %v885, %v877
    %v1390 = vpack.c.bf16 %v886, %v878
    %v1391 = vpack.c.bf16 %v887, %v879
    %v1392 = vpack.c.bf16 %v888, %v880
    %v1393 = vpack.c.bf16 %v889, %v881
    %v1394 = vpack.c.bf16 %v890, %v882
    %v1395 = vpack.c.bf16 %v899, %v891
    %v1396 = vpack.c.bf16 %v900, %v892
    %v1397 = vpack.c.bf16 %v901, %v893
    %v1398 = vpack.c.bf16 %v902, %v894
    %v1399 = vpack.c.bf16 %v903, %v895
    %v1400 = vpack.c.bf16 %v904, %v896
    %v1401 = vpack.c.bf16 %v905, %v897
    %v1402 = vpack.c.bf16 %v906, %v898
    %v1403 = vpack.c.bf16 %v915, %v907
    %v1404 = vpack.c.bf16 %v916, %v908
    %v1405 = vpack.c.bf16 %v917, %v909
    %v1406 = vpack.c.bf16 %v918, %v910
    %v1407 = vpack.c.bf16 %v919, %v911
    %v1408 = vpack.c.bf16 %v920, %v912
    %v1409 = vpack.c.bf16 %v921, %v913
    %v1410 = vpack.c.bf16 %v922, %v914
    %v1411 = vpack.c.bf16 %v931, %v923
    %v1412 = vpack.c.bf16 %v932, %v924
    %v1413 = vpack.c.bf16 %v933, %v925
    %v1414 = vpack.c.bf16 %v934, %v926
    %v1415 = vpack.c.bf16 %v935, %v927
    %v1416 = vpack.c.bf16 %v936, %v928
    %v1417 = vpack.c.bf16 %v937, %v929
    %v1418 = vpack.c.bf16 %v938, %v930
    %v1419 = vpack.c.bf16 %v947, %v939
    %v1420 = vpack.c.bf16 %v948, %v940
    %v1421 = vpack.c.bf16 %v949, %v941
    %v1422 = vpack.c.bf16 %v950, %v942
    %v1423 = vpack.c.bf16 %v951, %v943
    %v1424 = vpack.c.bf16 %v952, %v944
    %v1425 = vpack.c.bf16 %v953, %v945
    %v1426 = vpack.c.bf16 %v954, %v946
    %v1427 = vpack.c.bf16 %v963, %v955
    %v1428 = vpack.c.bf16 %v964, %v956
    %v1429 = vpack.c.bf16 %v965, %v957
    %v1430 = vpack.c.bf16 %v966, %v958
    %v1431 = vpack.c.bf16 %v967, %v959
    %v1432 = vpack.c.bf16 %v968, %v960
    %v1433 = vpack.c.bf16 %v969, %v961
    %v1434 = vpack.c.bf16 %v970, %v962
    %v1435 = vpack.c.bf16 %v979, %v971
    %v1436 = vpack.c.bf16 %v980, %v972
    %v1437 = vpack.c.bf16 %v981, %v973
    %v1438 = vpack.c.bf16 %v982, %v974
    %v1439 = vpack.c.bf16 %v983, %v975
    %v1440 = vpack.c.bf16 %v984, %v976
    %v1441 = vpack.c.bf16 %v985, %v977
    %v1442 = vpack.c.bf16 %v986, %v978
    %v1443 = vpack.c.bf16 %v995, %v987
    %v1444 = vpack.c.bf16 %v996, %v988
    %v1445 = vpack.c.bf16 %v997, %v989
    %v1446 = vpack.c.bf16 %v998, %v990
    %v1447 = vpack.c.bf16 %v999, %v991
    %v1448 = vpack.c.bf16 %v1000, %v992
    %v1449 = vpack.c.bf16 %v1001, %v993
    %v1450 = vpack.c.bf16 %v1002, %v994
    %v1451 = vpack.c.bf16 %v1011, %v1003
    %v1452 = vpack.c.bf16 %v1012, %v1004
    %v1453 = vpack.c.bf16 %v1013, %v1005
    %v1454 = vpack.c.bf16 %v1014, %v1006
    %v1455 = vpack.c.bf16 %v1015, %v1007
    %v1456 = vpack.c.bf16 %v1016, %v1008
    %v1457 = vpack.c.bf16 %v1017, %v1009
    %v1458 = vpack.c.bf16 %v1018, %v1010
    %v1459 = vpack.c.bf16 %v1027, %v1019
    %v1460 = vpack.c.bf16 %v1028, %v1020
    %v1461 = vpack.c.bf16 %v1029, %v1021
    %v1462 = vpack.c.bf16 %v1030, %v1022
    %v1463 = vpack.c.bf16 %v1031, %v1023
    %v1464 = vpack.c.bf16 %v1032, %v1024
    %v1465 = vpack.c.bf16 %v1033, %v1025
    %v1466 = vpack.c.bf16 %v1034, %v1026
    %v1467 = vpack.c.bf16 %v1043, %v1035
    %v1468 = vpack.c.bf16 %v1044, %v1036
    %v1469 = vpack.c.bf16 %v1045, %v1037
    %v1470 = vpack.c.bf16 %v1046, %v1038
    %v1471 = vpack.c.bf16 %v1047, %v1039
    %v1472 = vpack.c.bf16 %v1048, %v1040
    %v1473 = vpack.c.bf16 %v1049, %v1041
    %v1474 = vpack.c.bf16 %v1050, %v1042
    %v1475 = vpack.c.bf16 %v1059, %v1051
    %v1476 = vpack.c.bf16 %v1060, %v1052
    %v1477 = vpack.c.bf16 %v1061, %v1053
    %v1478 = vpack.c.bf16 %v1062, %v1054
    %v1479 = vpack.c.bf16 %v1063, %v1055
    %v1480 = vpack.c.bf16 %v1064, %v1056
    %v1481 = vpack.c.bf16 %v1065, %v1057
    %v1482 = vpack.c.bf16 %v1066, %v1058
    %v1483 = vpack.c.bf16 %v1075, %v1067
    %v1484 = vpack.c.bf16 %v1076, %v1068
    %v1485 = vpack.c.bf16 %v1077, %v1069
    %v1486 = vpack.c.bf16 %v1078, %v1070
    %v1487 = vpack.c.bf16 %v1079, %v1071
    %v1488 = vpack.c.bf16 %v1080, %v1072
    %v1489 = vpack.c.bf16 %v1081, %v1073
    %v1490 = vpack.c.bf16 %v1082, %v1074
    %v1491 = vpack.c.bf16 %v1091, %v1083
    %v1492 = vpack.c.bf16 %v1092, %v1084
    %v1493 = vpack.c.bf16 %v1093, %v1085
    %v1494 = vpack.c.bf16 %v1094, %v1086
    %v1495 = vpack.c.bf16 %v1095, %v1087
    %v1496 = vpack.c.bf16 %v1096, %v1088
    %v1497 = vpack.c.bf16 %v1097, %v1089
    %v1498 = vpack.c.bf16 %v1098, %v1090
    %v1499 = vpack.c.bf16 %v1107, %v1099
    %v1500 = vpack.c.bf16 %v1108, %v1100
    %v1501 = vpack.c.bf16 %v1109, %v1101
    %v1502 = vpack.c.bf16 %v1110, %v1102
    %v1503 = vpack.c.bf16 %v1111, %v1103
    %v1504 = vpack.c.bf16 %v1112, %v1104
    %v1505 = vpack.c.bf16 %v1113, %v1105
    %v1506 = vpack.c.bf16 %v1114, %v1106
    %v1507 = vpack.c.bf16 %v1123, %v1115
    %v1508 = vpack.c.bf16 %v1124, %v1116
    %v1509 = vpack.c.bf16 %v1125, %v1117
    %v1510 = vpack.c.bf16 %v1126, %v1118
    %v1511 = vpack.c.bf16 %v1127, %v1119
    %v1512 = vpack.c.bf16 %v1128, %v1120
    %v1513 = vpack.c.bf16 %v1129, %v1121
    %v1514 = vpack.c.bf16 %v1130, %v1122
    %v1515 = vpack.c.bf16 %v1139, %v1131
    %v1516 = vpack.c.bf16 %v1140, %v1132
    %v1517 = vpack.c.bf16 %v1141, %v1133
    %v1518 = vpack.c.bf16 %v1142, %v1134
    %v1519 = vpack.c.bf16 %v1143, %v1135
    %v1520 = vpack.c.bf16 %v1144, %v1136
    %v1521 = vpack.c.bf16 %v1145, %v1137
    %v1522 = vpack.c.bf16 %v1146, %v1138
    %v1523 = vpack.c.bf16 %v1155, %v1147
    %v1524 = vpack.c.bf16 %v1156, %v1148
    %v1525 = vpack.c.bf16 %v1157, %v1149
    %v1526 = vpack.c.bf16 %v1158, %v1150
    %v1527 = vpack.c.bf16 %v1159, %v1151
    %v1528 = vpack.c.bf16 %v1160, %v1152
    %v1529 = vpack.c.bf16 %v1161, %v1153
    %v1530 = vpack.c.bf16 %v1162, %v1154
    %v1531 = vpack.c.bf16 %v1171, %v1163
    %v1532 = vpack.c.bf16 %v1172, %v1164
    %v1533 = vpack.c.bf16 %v1173, %v1165
    %v1534 = vpack.c.bf16 %v1174, %v1166
    %v1535 = vpack.c.bf16 %v1175, %v1167
    %v1536 = vpack.c.bf16 %v1176, %v1168
    %v1537 = vpack.c.bf16 %v1177, %v1169
    %v1538 = vpack.c.bf16 %v1178, %v1170
    %v1539 = vpack.c.bf16 %v1187, %v1179
    %v1540 = vpack.c.bf16 %v1188, %v1180
    %v1541 = vpack.c.bf16 %v1189, %v1181
    %v1542 = vpack.c.bf16 %v1190, %v1182
    %v1543 = vpack.c.bf16 %v1191, %v1183
    %v1544 = vpack.c.bf16 %v1192, %v1184
    %v1545 = vpack.c.bf16 %v1193, %v1185
    %v1546 = vpack.c.bf16 %v1194, %v1186
    %v1547 = vpack.c.bf16 %v1203, %v1195
    %v1548 = vpack.c.bf16 %v1204, %v1196
    %v1549 = vpack.c.bf16 %v1205, %v1197
    %v1550 = vpack.c.bf16 %v1206, %v1198
    %v1551 = vpack.c.bf16 %v1207, %v1199
    %v1552 = vpack.c.bf16 %v1208, %v1200
    %v1553 = vpack.c.bf16 %v1209, %v1201
    %v1554 = vpack.c.bf16 %v1210, %v1202
    %v1555 = vpack.c.bf16 %v1219, %v1211
    %v1556 = vpack.c.bf16 %v1220, %v1212
    %v1557 = vpack.c.bf16 %v1221, %v1213
    %v1558 = vpack.c.bf16 %v1222, %v1214
    %v1559 = vpack.c.bf16 %v1223, %v1215
    %v1560 = vpack.c.bf16 %v1224, %v1216
    %v1561 = vpack.c.bf16 %v1225, %v1217
    %v1562 = vpack.c.bf16 %v1226, %v1218
    %v1563 = vpack.c.bf16 %v1235, %v1227
    %v1564 = vpack.c.bf16 %v1236, %v1228
    %v1565 = vpack.c.bf16 %v1237, %v1229
    %v1566 = vpack.c.bf16 %v1238, %v1230
    %v1567 = vpack.c.bf16 %v1239, %v1231
    %v1568 = vpack.c.bf16 %v1240, %v1232
    %v1569 = vpack.c.bf16 %v1241, %v1233
    %v1570 = vpack.c.bf16 %v1242, %v1234
    %v1571 = vpack.c.bf16 %v1251, %v1243
    %v1572 = vpack.c.bf16 %v1252, %v1244
    %v1573 = vpack.c.bf16 %v1253, %v1245
    %v1574 = vpack.c.bf16 %v1254, %v1246
    %v1575 = vpack.c.bf16 %v1255, %v1247
    %v1576 = vpack.c.bf16 %v1256, %v1248
    %v1577 = vpack.c.bf16 %v1257, %v1249
    %v1578 = vpack.c.bf16 %v1258, %v1250
    %v1579 = vpack.c.bf16 %v1267, %v1259
    %v1580 = vpack.c.bf16 %v1268, %v1260
    %v1581 = vpack.c.bf16 %v1269, %v1261
    %v1582 = vpack.c.bf16 %v1270, %v1262
    %v1583 = vpack.c.bf16 %v1271, %v1263
    %v1584 = vpack.c.bf16 %v1272, %v1264
    %v1585 = vpack.c.bf16 %v1273, %v1265
    %v1586 = vpack.c.bf16 %v1274, %v1266
    %v1587 = vpack.c.bf16 %v1283, %v1275
    %v1588 = vpack.c.bf16 %v1284, %v1276
    %v1589 = vpack.c.bf16 %v1285, %v1277
    %v1590 = vpack.c.bf16 %v1286, %v1278
    %v1591 = vpack.c.bf16 %v1287, %v1279
    %v1592 = vpack.c.bf16 %v1288, %v1280
    %v1593 = vpack.c.bf16 %v1289, %v1281
    %v1594 = vpack.c.bf16 %v1290, %v1282
    %v1595 = vpack.c.bf16 %v1299, %v1291
    %v1596 = vpack.c.bf16 %v1300, %v1292
    %v1597 = vpack.c.bf16 %v1301, %v1293
    %v1598 = vpack.c.bf16 %v1302, %v1294
    %v1599 = vpack.c.bf16 %v1303, %v1295
    %v1600 = vpack.c.bf16 %v1304, %v1296
    %v1601 = vpack.c.bf16 %v1305, %v1297
    %v1602 = vpack.c.bf16 %v1306, %v1298
    %v1603 = vpack.c.bf16 %v1315, %v1307
    %v1604 = vpack.c.bf16 %v1316, %v1308
    %v1605 = vpack.c.bf16 %v1317, %v1309
    %v1606 = vpack.c.bf16 %v1318, %v1310
    %v1607 = vpack.c.bf16 %v1319, %v1311
    %v1608 = vpack.c.bf16 %v1320, %v1312
    %v1609 = vpack.c.bf16 %v1321, %v1313
    %v1610 = vpack.c.bf16 %v1322, %v1314
    %v1611 = vpack.c.bf16 %v1331, %v1323
    %v1612 = vpack.c.bf16 %v1332, %v1324
    %v1613 = vpack.c.bf16 %v1333, %v1325
    %v1614 = vpack.c.bf16 %v1334, %v1326
    %v1615 = vpack.c.bf16 %v1335, %v1327
    %v1616 = vpack.c.bf16 %v1336, %v1328
    %v1617 = vpack.c.bf16 %v1337, %v1329
    %v1618 = vpack.c.bf16 %v1338, %v1330
    %v1619 = vpack.c.bf16 %v1347, %v1339
    %v1620 = vpack.c.bf16 %v1348, %v1340
    %v1621 = vpack.c.bf16 %v1349, %v1341
    %v1622 = vpack.c.bf16 %v1350, %v1342
    %v1623 = vpack.c.bf16 %v1351, %v1343
    %v1624 = vpack.c.bf16 %v1352, %v1344
    %v1625 = vpack.c.bf16 %v1353, %v1345
    %v1626 = vpack.c.bf16 %v1354, %v1346
    %v1627 = vpack.c.bf16 %v1363, %v1355
    %v1628 = vpack.c.bf16 %v1364, %v1356
    %v1629 = vpack.c.bf16 %v1365, %v1357
    %v1630 = vpack.c.bf16 %v1366, %v1358
    %v1631 = vpack.c.bf16 %v1367, %v1359
    %v1632 = vpack.c.bf16 %v1368, %v1360
    %v1633 = vpack.c.bf16 %v1369, %v1361
    %v1634 = vpack.c.bf16 %v1370, %v1362
    %v1635 = vpack.c.bf16 %v1379, %v1371
    %v1636 = vpack.c.bf16 %v1380, %v1372
    %v1637 = vpack.c.bf16 %v1381, %v1373
    %v1638 = vpack.c.bf16 %v1382, %v1374
    %v1639 = vpack.c.bf16 %v1383, %v1375
    %v1640 = vpack.c.bf16 %v1384, %v1376
    %v1641 = vpack.c.bf16 %v1385, %v1377
    %v1642 = vpack.c.bf16 %v1386, %v1378
    %1643 = vmatpush.bf16.msra.mxu0 %v1443
    %1644 = vmatpush.bf16.msra.mxu0 %v1435
    %1645 = vmatpush.bf16.msra.mxu0 %v1427
    %1646 = vmatpush.bf16.msra.mxu0 %v1419
    %1647 = vmatpush.bf16.msra.mxu0 %v1411
    %1648 = vmatpush.bf16.msra.mxu0 %v1403
    %1649 = vmatpush.bf16.msra.mxu0 %v1395
    %1650 = vmatpush.bf16.msra.mxu0 %v1387
    %1651 = vmatmul.bf16.gmra.mxu0 %v231
    %v1652 = vpop.f32.mrf.mxu0
    %v1653 = vadd.f32 0.0, %v1652
    %v1654 = vpop.f32.mrf.mxu0
    %1655 = vdwg.mxu0
    %1656 = vmatpush.bf16.msra.mxu0 %v1507
    %1657 = vmatpush.bf16.msra.mxu0 %v1499
    %1658 = vmatpush.bf16.msra.mxu0 %v1491
    %1659 = vmatpush.bf16.msra.mxu0 %v1483
    %1660 = vmatpush.bf16.msra.mxu0 %v1475
    %1661 = vmatpush.bf16.msra.mxu0 %v1467
    %1662 = vmatpush.bf16.msra.mxu0 %v1459
    %1663 = vmatpush.bf16.msra.mxu0 %v1451
    %1664 = vmatmul.bf16.gmra.mxu0 %v232
    %v1665 = vpop.f32.mrf.mxu0
    %v1666 = vadd.f32 %v1653, %v1665
    %v1667 = vpop.f32.mrf.mxu0
    %1668 = vdwg.mxu0
    %1669 = vmatpush.bf16.msra.mxu0 %v1571
    %1670 = vmatpush.bf16.msra.mxu0 %v1563
    %1671 = vmatpush.bf16.msra.mxu0 %v1555
    %1672 = vmatpush.bf16.msra.mxu0 %v1547
    %1673 = vmatpush.bf16.msra.mxu0 %v1539
    %1674 = vmatpush.bf16.msra.mxu0 %v1531
    %1675 = vmatpush.bf16.msra.mxu0 %v1523
    %1676 = vmatpush.bf16.msra.mxu0 %v1515
    %1677 = vmatmul.bf16.gmra.mxu0 %v233
    %v1678 = vpop.f32.mrf.mxu0
    %v1679 = vadd.f32 %v1666, %v1678
    %v1680 = vpop.f32.mrf.mxu0
    %1681 = vdwg.mxu0
    %1682 = vmatpush.bf16.msra.mxu0 %v1635
    %1683 = vmatpush.bf16.msra.mxu0 %v1627
    %1684 = vmatpush.bf16.msra.mxu0 %v1619
    %1685 = vmatpush.bf16.msra.mxu0 %v1611
    %1686 = vmatpush.bf16.msra.mxu0 %v1603
    %1687 = vmatpush.bf16.msra.mxu0 %v1595
    %1688 = vmatpush.bf16.msra.mxu0 %v1587
    %1689 = vmatpush.bf16.msra.mxu0 %v1579
    %1690 = vmatmul.bf16.gmra.mxu0 %v234
    %v1691 = vpop.f32.mrf.mxu0
    %v1692 = vadd.f32 %v1679, %v1691
    %v1693 = vpop.f32.mrf.mxu0
    %1694 = vdwg.mxu0
    %1695 = vmatpush.bf16.msra.mxu0 %v1444
    %1696 = vmatpush.bf16.msra.mxu0 %v1436
    %1697 = vmatpush.bf16.msra.mxu0 %v1428
    %1698 = vmatpush.bf16.msra.mxu0 %v1420
    %1699 = vmatpush.bf16.msra.mxu0 %v1412
    %1700 = vmatpush.bf16.msra.mxu0 %v1404
    %1701 = vmatpush.bf16.msra.mxu0 %v1396
    %1702 = vmatpush.bf16.msra.mxu0 %v1388
    %1703 = vmatmul.bf16.gmra.mxu0 %v231
    %v1704 = vpop.f32.mrf.mxu0
    %v1705 = vadd.f32 0.0, %v1704
    %v1706 = vpop.f32.mrf.mxu0
    %1707 = vdwg.mxu0
    %1708 = vmatpush.bf16.msra.mxu0 %v1508
    %1709 = vmatpush.bf16.msra.mxu0 %v1500
    %1710 = vmatpush.bf16.msra.mxu0 %v1492
    %1711 = vmatpush.bf16.msra.mxu0 %v1484
    %1712 = vmatpush.bf16.msra.mxu0 %v1476
    %1713 = vmatpush.bf16.msra.mxu0 %v1468
    %1714 = vmatpush.bf16.msra.mxu0 %v1460
    %1715 = vmatpush.bf16.msra.mxu0 %v1452
    %1716 = vmatmul.bf16.gmra.mxu0 %v232
    %v1717 = vpop.f32.mrf.mxu0
    %v1718 = vadd.f32 %v1705, %v1717
    %v1719 = vpop.f32.mrf.mxu0
    %1720 = vdwg.mxu0
    %1721 = vmatpush.bf16.msra.mxu0 %v1572
    %1722 = vmatpush.bf16.msra.mxu0 %v1564
    %1723 = vmatpush.bf16.msra.mxu0 %v1556
    %1724 = vmatpush.bf16.msra.mxu0 %v1548
    %1725 = vmatpush.bf16.msra.mxu0 %v1540
    %1726 = vmatpush.bf16.msra.mxu0 %v1532
    %1727 = vmatpush.bf16.msra.mxu0 %v1524
    %1728 = vmatpush.bf16.msra.mxu0 %v1516
    %1729 = vmatmul.bf16.gmra.mxu0 %v233
    %v1730 = vpop.f32.mrf.mxu0
    %v1731 = vadd.f32 %v1718, %v1730
    %v1732 = vpop.f32.mrf.mxu0
    %1733 = vdwg.mxu0
    %1734 = vmatpush.bf16.msra.mxu0 %v1636
    %1735 = vmatpush.bf16.msra.mxu0 %v1628
    %1736 = vmatpush.bf16.msra.mxu0 %v1620
    %1737 = vmatpush.bf16.msra.mxu0 %v1612
    %1738 = vmatpush.bf16.msra.mxu0 %v1604
    %1739 = vmatpush.bf16.msra.mxu0 %v1596
    %1740 = vmatpush.bf16.msra.mxu0 %v1588
    %1741 = vmatpush.bf16.msra.mxu0 %v1580
    %1742 = vmatmul.bf16.gmra.mxu0 %v234
    %v1743 = vpop.f32.mrf.mxu0
    %v1744 = vadd.f32 %v1731, %v1743
    %v1745 = vpop.f32.mrf.mxu0
    %1746 = vdwg.mxu0
    %1747 = vmatpush.bf16.msra.mxu0 %v1445
    %1748 = vmatpush.bf16.msra.mxu0 %v1437
    %1749 = vmatpush.bf16.msra.mxu0 %v1429
    %1750 = vmatpush.bf16.msra.mxu0 %v1421
    %1751 = vmatpush.bf16.msra.mxu0 %v1413
    %1752 = vmatpush.bf16.msra.mxu0 %v1405
    %1753 = vmatpush.bf16.msra.mxu0 %v1397
    %1754 = vmatpush.bf16.msra.mxu0 %v1389
    %1755 = vmatmul.bf16.gmra.mxu0 %v231
    %v1756 = vpop.f32.mrf.mxu0
    %v1757 = vadd.f32 0.0, %v1756
    %v1758 = vpop.f32.mrf.mxu0
    %1759 = vdwg.mxu0
    %1760 = vmatpush.bf16.msra.mxu0 %v1509
    %1761 = vmatpush.bf16.msra.mxu0 %v1501
    %1762 = vmatpush.bf16.msra.mxu0 %v1493
    %1763 = vmatpush.bf16.msra.mxu0 %v1485
    %1764 = vmatpush.bf16.msra.mxu0 %v1477
    %1765 = vmatpush.bf16.msra.mxu0 %v1469
    %1766 = vmatpush.bf16.msra.mxu0 %v1461
    %1767 = vmatpush.bf16.msra.mxu0 %v1453
    %1768 = vmatmul.bf16.gmra.mxu0 %v232
    %v1769 = vpop.f32.mrf.mxu0
    %v1770 = vadd.f32 %v1757, %v1769
    %v1771 = vpop.f32.mrf.mxu0
    %1772 = vdwg.mxu0
    %1773 = vmatpush.bf16.msra.mxu0 %v1573
    %1774 = vmatpush.bf16.msra.mxu0 %v1565
    %1775 = vmatpush.bf16.msra.mxu0 %v1557
    %1776 = vmatpush.bf16.msra.mxu0 %v1549
    %1777 = vmatpush.bf16.msra.mxu0 %v1541
    %1778 = vmatpush.bf16.msra.mxu0 %v1533
    %1779 = vmatpush.bf16.msra.mxu0 %v1525
    %1780 = vmatpush.bf16.msra.mxu0 %v1517
    %1781 = vmatmul.bf16.gmra.mxu0 %v233
    %v1782 = vpop.f32.mrf.mxu0
    %v1783 = vadd.f32 %v1770, %v1782
    %v1784 = vpop.f32.mrf.mxu0
    %1785 = vdwg.mxu0
    %1786 = vmatpush.bf16.msra.mxu0 %v1637
    %1787 = vmatpush.bf16.msra.mxu0 %v1629
    %1788 = vmatpush.bf16.msra.mxu0 %v1621
    %1789 = vmatpush.bf16.msra.mxu0 %v1613
    %1790 = vmatpush.bf16.msra.mxu0 %v1605
    %1791 = vmatpush.bf16.msra.mxu0 %v1597
    %1792 = vmatpush.bf16.msra.mxu0 %v1589
    %1793 = vmatpush.bf16.msra.mxu0 %v1581
    %1794 = vmatmul.bf16.gmra.mxu0 %v234
    %v1795 = vpop.f32.mrf.mxu0
    %v1796 = vadd.f32 %v1783, %v1795
    %v1797 = vpop.f32.mrf.mxu0
    %1798 = vdwg.mxu0
    %1799 = vmatpush.bf16.msra.mxu0 %v1446
    %1800 = vmatpush.bf16.msra.mxu0 %v1438
    %1801 = vmatpush.bf16.msra.mxu0 %v1430
    %1802 = vmatpush.bf16.msra.mxu0 %v1422
    %1803 = vmatpush.bf16.msra.mxu0 %v1414
    %1804 = vmatpush.bf16.msra.mxu0 %v1406
    %1805 = vmatpush.bf16.msra.mxu0 %v1398
    %1806 = vmatpush.bf16.msra.mxu0 %v1390
    %1807 = vmatmul.bf16.gmra.mxu0 %v231
    %v1808 = vpop.f32.mrf.mxu0
    %v1809 = vadd.f32 0.0, %v1808
    %v1810 = vpop.f32.mrf.mxu0
    %1811 = vdwg.mxu0
    %1812 = vmatpush.bf16.msra.mxu0 %v1510
    %1813 = vmatpush.bf16.msra.mxu0 %v1502
    %1814 = vmatpush.bf16.msra.mxu0 %v1494
    %1815 = vmatpush.bf16.msra.mxu0 %v1486
    %1816 = vmatpush.bf16.msra.mxu0 %v1478
    %1817 = vmatpush.bf16.msra.mxu0 %v1470
    %1818 = vmatpush.bf16.msra.mxu0 %v1462
    %1819 = vmatpush.bf16.msra.mxu0 %v1454
    %1820 = vmatmul.bf16.gmra.mxu0 %v232
    %v1821 = vpop.f32.mrf.mxu0
    %v1822 = vadd.f32 %v1809, %v1821
    %v1823 = vpop.f32.mrf.mxu0
    %1824 = vdwg.mxu0
    %1825 = vmatpush.bf16.msra.mxu0 %v1574
    %1826 = vmatpush.bf16.msra.mxu0 %v1566
    %1827 = vmatpush.bf16.msra.mxu0 %v1558
    %1828 = vmatpush.bf16.msra.mxu0 %v1550
    %1829 = vmatpush.bf16.msra.mxu0 %v1542
    %1830 = vmatpush.bf16.msra.mxu0 %v1534
    %1831 = vmatpush.bf16.msra.mxu0 %v1526
    %1832 = vmatpush.bf16.msra.mxu0 %v1518
    %1833 = vmatmul.bf16.gmra.mxu0 %v233
    %v1834 = vpop.f32.mrf.mxu0
    %v1835 = vadd.f32 %v1822, %v1834
    %v1836 = vpop.f32.mrf.mxu0
    %1837 = vdwg.mxu0
    %1838 = vmatpush.bf16.msra.mxu0 %v1638
    %1839 = vmatpush.bf16.msra.mxu0 %v1630
    %1840 = vmatpush.bf16.msra.mxu0 %v1622
    %1841 = vmatpush.bf16.msra.mxu0 %v1614
    %1842 = vmatpush.bf16.msra.mxu0 %v1606
    %1843 = vmatpush.bf16.msra.mxu0 %v1598
    %1844 = vmatpush.bf16.msra.mxu0 %v1590
    %1845 = vmatpush.bf16.msra.mxu0 %v1582
    %1846 = vmatmul.bf16.gmra.mxu0 %v234
    %v1847 = vpop.f32.mrf.mxu0
    %v1848 = vadd.f32 %v1835, %v1847
    %v1849 = vpop.f32.mrf.mxu0
    %1850 = vdwg.mxu0
    %1851 = vmatpush.bf16.msra.mxu0 %v1447
    %1852 = vmatpush.bf16.msra.mxu0 %v1439
    %1853 = vmatpush.bf16.msra.mxu0 %v1431
    %1854 = vmatpush.bf16.msra.mxu0 %v1423
    %1855 = vmatpush.bf16.msra.mxu0 %v1415
    %1856 = vmatpush.bf16.msra.mxu0 %v1407
    %1857 = vmatpush.bf16.msra.mxu0 %v1399
    %1858 = vmatpush.bf16.msra.mxu0 %v1391
    %1859 = vmatmul.bf16.gmra.mxu0 %v231
    %v1860 = vpop.f32.mrf.mxu0
    %v1861 = vadd.f32 0.0, %v1860
    %v1862 = vpop.f32.mrf.mxu0
    %1863 = vdwg.mxu0
    %1864 = vmatpush.bf16.msra.mxu0 %v1511
    %1865 = vmatpush.bf16.msra.mxu0 %v1503
    %1866 = vmatpush.bf16.msra.mxu0 %v1495
    %1867 = vmatpush.bf16.msra.mxu0 %v1487
    %1868 = vmatpush.bf16.msra.mxu0 %v1479
    %1869 = vmatpush.bf16.msra.mxu0 %v1471
    %1870 = vmatpush.bf16.msra.mxu0 %v1463
    %1871 = vmatpush.bf16.msra.mxu0 %v1455
    %1872 = vmatmul.bf16.gmra.mxu0 %v232
    %v1873 = vpop.f32.mrf.mxu0
    %v1874 = vadd.f32 %v1861, %v1873
    %v1875 = vpop.f32.mrf.mxu0
    %1876 = vdwg.mxu0
    %1877 = vmatpush.bf16.msra.mxu0 %v1575
    %1878 = vmatpush.bf16.msra.mxu0 %v1567
    %1879 = vmatpush.bf16.msra.mxu0 %v1559
    %1880 = vmatpush.bf16.msra.mxu0 %v1551
    %1881 = vmatpush.bf16.msra.mxu0 %v1543
    %1882 = vmatpush.bf16.msra.mxu0 %v1535
    %1883 = vmatpush.bf16.msra.mxu0 %v1527
    %1884 = vmatpush.bf16.msra.mxu0 %v1519
    %1885 = vmatmul.bf16.gmra.mxu0 %v233
    %v1886 = vpop.f32.mrf.mxu0
    %v1887 = vadd.f32 %v1874, %v1886
    %v1888 = vpop.f32.mrf.mxu0
    %1889 = vdwg.mxu0
    %1890 = vmatpush.bf16.msra.mxu0 %v1639
    %1891 = vmatpush.bf16.msra.mxu0 %v1631
    %1892 = vmatpush.bf16.msra.mxu0 %v1623
    %1893 = vmatpush.bf16.msra.mxu0 %v1615
    %1894 = vmatpush.bf16.msra.mxu0 %v1607
    %1895 = vmatpush.bf16.msra.mxu0 %v1599
    %1896 = vmatpush.bf16.msra.mxu0 %v1591
    %1897 = vmatpush.bf16.msra.mxu0 %v1583
    %1898 = vmatmul.bf16.gmra.mxu0 %v234
    %v1899 = vpop.f32.mrf.mxu0
    %v1900 = vadd.f32 %v1887, %v1899
    %v1901 = vpop.f32.mrf.mxu0
    %1902 = vdwg.mxu0
    %1903 = vmatpush.bf16.msra.mxu0 %v1448
    %1904 = vmatpush.bf16.msra.mxu0 %v1440
    %1905 = vmatpush.bf16.msra.mxu0 %v1432
    %1906 = vmatpush.bf16.msra.mxu0 %v1424
    %1907 = vmatpush.bf16.msra.mxu0 %v1416
    %1908 = vmatpush.bf16.msra.mxu0 %v1408
    %1909 = vmatpush.bf16.msra.mxu0 %v1400
    %1910 = vmatpush.bf16.msra.mxu0 %v1392
    %1911 = vmatmul.bf16.gmra.mxu0 %v231
    %v1912 = vpop.f32.mrf.mxu0
    %v1913 = vadd.f32 0.0, %v1912
    %v1914 = vpop.f32.mrf.mxu0
    %1915 = vdwg.mxu0
    %1916 = vmatpush.bf16.msra.mxu0 %v1512
    %1917 = vmatpush.bf16.msra.mxu0 %v1504
    %1918 = vmatpush.bf16.msra.mxu0 %v1496
    %1919 = vmatpush.bf16.msra.mxu0 %v1488
    %1920 = vmatpush.bf16.msra.mxu0 %v1480
    %1921 = vmatpush.bf16.msra.mxu0 %v1472
    %1922 = vmatpush.bf16.msra.mxu0 %v1464
    %1923 = vmatpush.bf16.msra.mxu0 %v1456
    %1924 = vmatmul.bf16.gmra.mxu0 %v232
    %v1925 = vpop.f32.mrf.mxu0
    %v1926 = vadd.f32 %v1913, %v1925
    %v1927 = vpop.f32.mrf.mxu0
    %1928 = vdwg.mxu0
    %1929 = vmatpush.bf16.msra.mxu0 %v1576
    %1930 = vmatpush.bf16.msra.mxu0 %v1568
    %1931 = vmatpush.bf16.msra.mxu0 %v1560
    %1932 = vmatpush.bf16.msra.mxu0 %v1552
    %1933 = vmatpush.bf16.msra.mxu0 %v1544
    %1934 = vmatpush.bf16.msra.mxu0 %v1536
    %1935 = vmatpush.bf16.msra.mxu0 %v1528
    %1936 = vmatpush.bf16.msra.mxu0 %v1520
    %1937 = vmatmul.bf16.gmra.mxu0 %v233
    %v1938 = vpop.f32.mrf.mxu0
    %v1939 = vadd.f32 %v1926, %v1938
    %v1940 = vpop.f32.mrf.mxu0
    %1941 = vdwg.mxu0
    %1942 = vmatpush.bf16.msra.mxu0 %v1640
    %1943 = vmatpush.bf16.msra.mxu0 %v1632
    %1944 = vmatpush.bf16.msra.mxu0 %v1624
    %1945 = vmatpush.bf16.msra.mxu0 %v1616
    %1946 = vmatpush.bf16.msra.mxu0 %v1608
    %1947 = vmatpush.bf16.msra.mxu0 %v1600
    %1948 = vmatpush.bf16.msra.mxu0 %v1592
    %1949 = vmatpush.bf16.msra.mxu0 %v1584
    %1950 = vmatmul.bf16.gmra.mxu0 %v234
    %v1951 = vpop.f32.mrf.mxu0
    %v1952 = vadd.f32 %v1939, %v1951
    %v1953 = vpop.f32.mrf.mxu0
    %1954 = vdwg.mxu0
    %1955 = vmatpush.bf16.msra.mxu0 %v1449
    %1956 = vmatpush.bf16.msra.mxu0 %v1441
    %1957 = vmatpush.bf16.msra.mxu0 %v1433
    %1958 = vmatpush.bf16.msra.mxu0 %v1425
    %1959 = vmatpush.bf16.msra.mxu0 %v1417
    %1960 = vmatpush.bf16.msra.mxu0 %v1409
    %1961 = vmatpush.bf16.msra.mxu0 %v1401
    %1962 = vmatpush.bf16.msra.mxu0 %v1393
    %1963 = vmatmul.bf16.gmra.mxu0 %v231
    %v1964 = vpop.f32.mrf.mxu0
    %v1965 = vadd.f32 0.0, %v1964
    %v1966 = vpop.f32.mrf.mxu0
    %1967 = vdwg.mxu0
    %1968 = vmatpush.bf16.msra.mxu0 %v1513
    %1969 = vmatpush.bf16.msra.mxu0 %v1505
    %1970 = vmatpush.bf16.msra.mxu0 %v1497
    %1971 = vmatpush.bf16.msra.mxu0 %v1489
    %1972 = vmatpush.bf16.msra.mxu0 %v1481
    %1973 = vmatpush.bf16.msra.mxu0 %v1473
    %1974 = vmatpush.bf16.msra.mxu0 %v1465
    %1975 = vmatpush.bf16.msra.mxu0 %v1457
    %1976 = vmatmul.bf16.gmra.mxu0 %v232
    %v1977 = vpop.f32.mrf.mxu0
    %v1978 = vadd.f32 %v1965, %v1977
    %v1979 = vpop.f32.mrf.mxu0
    %1980 = vdwg.mxu0
    %1981 = vmatpush.bf16.msra.mxu0 %v1577
    %1982 = vmatpush.bf16.msra.mxu0 %v1569
    %1983 = vmatpush.bf16.msra.mxu0 %v1561
    %1984 = vmatpush.bf16.msra.mxu0 %v1553
    %1985 = vmatpush.bf16.msra.mxu0 %v1545
    %1986 = vmatpush.bf16.msra.mxu0 %v1537
    %1987 = vmatpush.bf16.msra.mxu0 %v1529
    %1988 = vmatpush.bf16.msra.mxu0 %v1521
    %1989 = vmatmul.bf16.gmra.mxu0 %v233
    %v1990 = vpop.f32.mrf.mxu0
    %v1991 = vadd.f32 %v1978, %v1990
    %v1992 = vpop.f32.mrf.mxu0
    %1993 = vdwg.mxu0
    %1994 = vmatpush.bf16.msra.mxu0 %v1641
    %1995 = vmatpush.bf16.msra.mxu0 %v1633
    %1996 = vmatpush.bf16.msra.mxu0 %v1625
    %1997 = vmatpush.bf16.msra.mxu0 %v1617
    %1998 = vmatpush.bf16.msra.mxu0 %v1609
    %1999 = vmatpush.bf16.msra.mxu0 %v1601
    %2000 = vmatpush.bf16.msra.mxu0 %v1593
    %2001 = vmatpush.bf16.msra.mxu0 %v1585
    %2002 = vmatmul.bf16.gmra.mxu0 %v234
    %v2003 = vpop.f32.mrf.mxu0
    %v2004 = vadd.f32 %v1991, %v2003
    %v2005 = vpop.f32.mrf.mxu0
    %2006 = vdwg.mxu0
    %2007 = vmatpush.bf16.msra.mxu0 %v1450
    %2008 = vmatpush.bf16.msra.mxu0 %v1442
    %2009 = vmatpush.bf16.msra.mxu0 %v1434
    %2010 = vmatpush.bf16.msra.mxu0 %v1426
    %2011 = vmatpush.bf16.msra.mxu0 %v1418
    %2012 = vmatpush.bf16.msra.mxu0 %v1410
    %2013 = vmatpush.bf16.msra.mxu0 %v1402
    %2014 = vmatpush.bf16.msra.mxu0 %v1394
    %2015 = vmatmul.bf16.gmra.mxu0 %v231
    %v2016 = vpop.f32.mrf.mxu0
    %v2017 = vadd.f32 0.0, %v2016
    %v2018 = vpop.f32.mrf.mxu0
    %2019 = vdwg.mxu0
    %2020 = vmatpush.bf16.msra.mxu0 %v1514
    %2021 = vmatpush.bf16.msra.mxu0 %v1506
    %2022 = vmatpush.bf16.msra.mxu0 %v1498
    %2023 = vmatpush.bf16.msra.mxu0 %v1490
    %2024 = vmatpush.bf16.msra.mxu0 %v1482
    %2025 = vmatpush.bf16.msra.mxu0 %v1474
    %2026 = vmatpush.bf16.msra.mxu0 %v1466
    %2027 = vmatpush.bf16.msra.mxu0 %v1458
    %2028 = vmatmul.bf16.gmra.mxu0 %v232
    %v2029 = vpop.f32.mrf.mxu0
    %v2030 = vadd.f32 %v2017, %v2029
    %v2031 = vpop.f32.mrf.mxu0
    %2032 = vdwg.mxu0
    %2033 = vmatpush.bf16.msra.mxu0 %v1578
    %2034 = vmatpush.bf16.msra.mxu0 %v1570
    %2035 = vmatpush.bf16.msra.mxu0 %v1562
    %2036 = vmatpush.bf16.msra.mxu0 %v1554
    %2037 = vmatpush.bf16.msra.mxu0 %v1546
    %2038 = vmatpush.bf16.msra.mxu0 %v1538
    %2039 = vmatpush.bf16.msra.mxu0 %v1530
    %2040 = vmatpush.bf16.msra.mxu0 %v1522
    %2041 = vmatmul.bf16.gmra.mxu0 %v233
    %v2042 = vpop.f32.mrf.mxu0
    %v2043 = vadd.f32 %v2030, %v2042
    %v2044 = vpop.f32.mrf.mxu0
    %2045 = vdwg.mxu0
    %2046 = vmatpush.bf16.msra.mxu0 %v1642
    %2047 = vmatpush.bf16.msra.mxu0 %v1634
    %2048 = vmatpush.bf16.msra.mxu0 %v1626
    %2049 = vmatpush.bf16.msra.mxu0 %v1618
    %2050 = vmatpush.bf16.msra.mxu0 %v1610
    %2051 = vmatpush.bf16.msra.mxu0 %v1602
    %2052 = vmatpush.bf16.msra.mxu0 %v1594
    %2053 = vmatpush.bf16.msra.mxu0 %v1586
    %2054 = vmatmul.bf16.gmra.mxu0 %v234
    %v2055 = vpop.f32.mrf.mxu0
    %v2056 = vadd.f32 %v2043, %v2055
    %v2057 = vpop.f32.mrf.mxu0
    %2058 = vdwg.mxu0
    %v2059 = vld [vmem:[#allocation10] sm:$0xff]
    %v2061 = vperm.slane %v2059, 0
    %v2062 = vperm.slane %v2059, 1
    %v2063 = vperm.slane %v2059, 2
    %v2064 = vperm.slane %v2059, 3
    %v2065 = vperm.slane %v2059, 4
    %v2066 = vperm.slane %v2059, 5
    %v2067 = vperm.slane %v2059, 6
    %v2068 = vperm.slane %v2059, 7
    %v2077 = vmul.f32 %v1692, %v2061
    %v2078 = vmul.f32 %v1744, %v2062
    %v2079 = vmul.f32 %v1796, %v2063
    %v2080 = vmul.f32 %v1848, %v2064
    %v2081 = vmul.f32 %v1900, %v2065
    %v2082 = vmul.f32 %v1952, %v2066
    %v2083 = vmul.f32 %v2004, %v2067
    %v2084 = vmul.f32 %v2056, %v2068
    %v2085 = vld [vmem:[#allocation11] sm:$0xff]
    %v2087 = vperm.slane %v2085, 0
    %v2088 = vperm.slane %v2085, 1
    %v2089 = vperm.slane %v2085, 2
    %v2090 = vperm.slane %v2085, 3
    %v2091 = vperm.slane %v2085, 4
    %v2092 = vperm.slane %v2085, 5
    %v2093 = vperm.slane %v2085, 6
    %v2094 = vperm.slane %v2085, 7
    %v2103 = vadd.f32 %v2077, %v2087
    %v2104 = vadd.f32 %v2078, %v2088
    %v2105 = vadd.f32 %v2079, %v2089
    %v2106 = vadd.f32 %v2080, %v2090
    %v2107 = vadd.f32 %v2081, %v2091
    %v2108 = vadd.f32 %v2082, %v2092
    %v2109 = vadd.f32 %v2083, %v2093
    %v2110 = vadd.f32 %v2084, %v2094
    %v2111 = vxor.u32 %v2103, 2147483648
    %v2112 = vxor.u32 %v2104, 2147483648
    %v2113 = vxor.u32 %v2105, 2147483648
    %v2114 = vxor.u32 %v2106, 2147483648
    %v2115 = vxor.u32 %v2107, 2147483648
    %v2116 = vxor.u32 %v2108, 2147483648
    %v2117 = vxor.u32 %v2109, 2147483648
    %v2118 = vxor.u32 %v2110, 2147483648
    %v2119 = vmul.f32 %v2111, 1.442695
    %v2120 = vpow.pop %v2119
    %v2121 = vmul.f32 %v2112, 1.442695
    %v2122 = vpow.pop %v2121
    %v2123 = vmul.f32 %v2113, 1.442695
    %v2124 = vpow.pop %v2123
    %v2125 = vmul.f32 %v2114, 1.442695
    %v2126 = vpow.pop %v2125
    %v2127 = vmul.f32 %v2115, 1.442695
    %v2128 = vpow.pop %v2127
    %v2129 = vmul.f32 %v2116, 1.442695
    %v2130 = vpow.pop %v2129
    %v2131 = vmul.f32 %v2117, 1.442695
    %v2132 = vpow.pop %v2131
    %v2133 = vmul.f32 %v2118, 1.442695
    %v2134 = vpow.pop %v2133
    %v2135 = vadd.f32 %v2120, 1.0
    %v2136 = vadd.f32 %v2122, 1.0
    %v2137 = vadd.f32 %v2124, 1.0
    %v2138 = vadd.f32 %v2126, 1.0
    %v2139 = vadd.f32 %v2128, 1.0
    %v2140 = vadd.f32 %v2130, 1.0
    %v2141 = vadd.f32 %v2132, 1.0
    %v2142 = vadd.f32 %v2134, 1.0
    %v2143 = vrcp.pop %v2135
    %v2144 = vmul.f32 %v2135, %v2143
    %v2145 = vsub.f32 1.0, %v2144
    %v2146 = vmul.f32 %v2143, %v2145
    %v2147 = vadd.f32 %v2143, %v2146
    %vm2148 = vweird.f32 %v2135
    %vm2149 = vweird.f32 %v2143
    %vm2150 = vmor %vm2148, %vm2149
    %v2151 = vsel %vm2150, %v2143, %v2147
    %v2152 = vand.u32 2147483647, %v2135
    %vm2153 = vcmp.eq.f32.partialorder %v2152, 8.507059e+37
    %v2154 = vand.u32 %v2135, 2147483648
    %v2155 = vor.u32 1.1754944e-38, %v2154
    %v2156 = vsel %vm2153, %v2155, %v2151
    %v2157 = vmul.f32 1.0, %v2156
    %v2158 = vrcp.pop %v2136
    %v2159 = vmul.f32 %v2136, %v2158
    %v2160 = vsub.f32 1.0, %v2159
    %v2161 = vmul.f32 %v2158, %v2160
    %v2162 = vadd.f32 %v2158, %v2161
    %vm2163 = vweird.f32 %v2136
    %vm2164 = vweird.f32 %v2158
    %vm2165 = vmor %vm2163, %vm2164
    %v2166 = vsel %vm2165, %v2158, %v2162
    %v2167 = vand.u32 2147483647, %v2136
    %vm2168 = vcmp.eq.f32.partialorder %v2167, 8.507059e+37
    %v2169 = vand.u32 %v2136, 2147483648
    %v2170 = vor.u32 1.1754944e-38, %v2169
    %v2171 = vsel %vm2168, %v2170, %v2166
    %v2172 = vmul.f32 1.0, %v2171
    %v2173 = vrcp.pop %v2137
    %v2174 = vmul.f32 %v2137, %v2173
    %v2175 = vsub.f32 1.0, %v2174
    %v2176 = vmul.f32 %v2173, %v2175
    %v2177 = vadd.f32 %v2173, %v2176
    %vm2178 = vweird.f32 %v2137
    %vm2179 = vweird.f32 %v2173
    %vm2180 = vmor %vm2178, %vm2179
    %v2181 = vsel %vm2180, %v2173, %v2177
    %v2182 = vand.u32 2147483647, %v2137
    %vm2183 = vcmp.eq.f32.partialorder %v2182, 8.507059e+37
    %v2184 = vand.u32 %v2137, 2147483648
    %v2185 = vor.u32 1.1754944e-38, %v2184
    %v2186 = vsel %vm2183, %v2185, %v2181
    %v2187 = vmul.f32 1.0, %v2186
    %v2188 = vrcp.pop %v2138
    %v2189 = vmul.f32 %v2138, %v2188
    %v2190 = vsub.f32 1.0, %v2189
    %v2191 = vmul.f32 %v2188, %v2190
    %v2192 = vadd.f32 %v2188, %v2191
    %vm2193 = vweird.f32 %v2138
    %vm2194 = vweird.f32 %v2188
    %vm2195 = vmor %vm2193, %vm2194
    %v2196 = vsel %vm2195, %v2188, %v2192
    %v2197 = vand.u32 2147483647, %v2138
    %vm2198 = vcmp.eq.f32.partialorder %v2197, 8.507059e+37
    %v2199 = vand.u32 %v2138, 2147483648
    %v2200 = vor.u32 1.1754944e-38, %v2199
    %v2201 = vsel %vm2198, %v2200, %v2196
    %v2202 = vmul.f32 1.0, %v2201
    %v2203 = vrcp.pop %v2139
    %v2204 = vmul.f32 %v2139, %v2203
    %v2205 = vsub.f32 1.0, %v2204
    %v2206 = vmul.f32 %v2203, %v2205
    %v2207 = vadd.f32 %v2203, %v2206
    %vm2208 = vweird.f32 %v2139
    %vm2209 = vweird.f32 %v2203
    %vm2210 = vmor %vm2208, %vm2209
    %v2211 = vsel %vm2210, %v2203, %v2207
    %v2212 = vand.u32 2147483647, %v2139
    %vm2213 = vcmp.eq.f32.partialorder %v2212, 8.507059e+37
    %v2214 = vand.u32 %v2139, 2147483648
    %v2215 = vor.u32 1.1754944e-38, %v2214
    %v2216 = vsel %vm2213, %v2215, %v2211
    %v2217 = vmul.f32 1.0, %v2216
    %v2218 = vrcp.pop %v2140
    %v2219 = vmul.f32 %v2140, %v2218
    %v2220 = vsub.f32 1.0, %v2219
    %v2221 = vmul.f32 %v2218, %v2220
    %v2222 = vadd.f32 %v2218, %v2221
    %vm2223 = vweird.f32 %v2140
    %vm2224 = vweird.f32 %v2218
    %vm2225 = vmor %vm2223, %vm2224
    %v2226 = vsel %vm2225, %v2218, %v2222
    %v2227 = vand.u32 2147483647, %v2140
    %vm2228 = vcmp.eq.f32.partialorder %v2227, 8.507059e+37
    %v2229 = vand.u32 %v2140, 2147483648
    %v2230 = vor.u32 1.1754944e-38, %v2229
    %v2231 = vsel %vm2228, %v2230, %v2226
    %v2232 = vmul.f32 1.0, %v2231
    %v2233 = vrcp.pop %v2141
    %v2234 = vmul.f32 %v2141, %v2233
    %v2235 = vsub.f32 1.0, %v2234
    %v2236 = vmul.f32 %v2233, %v2235
    %v2237 = vadd.f32 %v2233, %v2236
    %vm2238 = vweird.f32 %v2141
    %vm2239 = vweird.f32 %v2233
    %vm2240 = vmor %vm2238, %vm2239
    %v2241 = vsel %vm2240, %v2233, %v2237
    %v2242 = vand.u32 2147483647, %v2141
    %vm2243 = vcmp.eq.f32.partialorder %v2242, 8.507059e+37
    %v2244 = vand.u32 %v2141, 2147483648
    %v2245 = vor.u32 1.1754944e-38, %v2244
    %v2246 = vsel %vm2243, %v2245, %v2241
    %v2247 = vmul.f32 1.0, %v2246
    %v2248 = vrcp.pop %v2142
    %v2249 = vmul.f32 %v2142, %v2248
    %v2250 = vsub.f32 1.0, %v2249
    %v2251 = vmul.f32 %v2248, %v2250
    %v2252 = vadd.f32 %v2248, %v2251
    %vm2253 = vweird.f32 %v2142
    %vm2254 = vweird.f32 %v2248
    %vm2255 = vmor %vm2253, %vm2254
    %v2256 = vsel %vm2255, %v2248, %v2252
    %v2257 = vand.u32 2147483647, %v2142
    %vm2258 = vcmp.eq.f32.partialorder %v2257, 8.507059e+37
    %v2259 = vand.u32 %v2142, 2147483648
    %v2260 = vor.u32 1.1754944e-38, %v2259
    %v2261 = vsel %vm2258, %v2260, %v2256
    %v2262 = vmul.f32 1.0, %v2261
    %v2263 = vpack.c.bf16 %v2172, %v2157
    %v2264 = vpack.c.bf16 %v2202, %v2187
    %v2265 = vpack.c.bf16 %v2232, %v2217
    %v2266 = vpack.c.bf16 %v2262, %v2247
    %v2271 = vrot.slane %v2263, 3
    %v2272 = vrot.slane %v2264, 6
    %v2273 = vrot.slane %v2264, 1
    %v2274 = vrot.slane %v2265, 4
    %v2275 = vrot.slane %v2265, 7
    %v2276 = vrot.slane %v2266, 2
    %v2277 = vrot.slane %v2266, 5
    %vm2278 = vcmask 1040384
    %v2281 = vsel %vm2278, %v2263, %v2271
    %vm2282 = vcmask 1042434
    %v2285 = vsel %vm2282, %v2272, %v2273
    %vm2286 = vcmask 1041408
    %v2287 = vsel %vm2286, %v2281, %v2285
    %vm2288 = vcmask 1044484
    %v2291 = vsel %vm2288, %v2274, %v2275
    %vm2292 = vcmask 1046534
    %v2295 = vsel %vm2292, %v2276, %v2277
    %vm2296 = vcmask 1045508
    %v2297 = vsel %vm2296, %v2291, %v2295
    %vm2298 = vcmask 1043456
    %v2299 = vsel %vm2298, %v2287, %v2297
    %2301 = vst [vmem:[#allocation13] sm:$0xff] %v2299
    // Predicated region
    $region50: #{tpu_custom_call.1} parent=1 // pred_check
      _
    $region51: #{tpu_custom_call.1} parent=1 // pred_check_branch
      %2303 = sbr.rel (0) target = $region53
    $region52: #{tpu_custom_call.1} parent=1 // pred_region
      %2305 = vsyncadd [#allocation4], 0
      %s2307 = sshll.u32 [#allocation13], 4
      %s2308 = int_to_ptr.vmem [resolvable:$true] %s2307
      %s2309 = sshll.u32 %s6, 4
      %s2310 = int_to_ptr.hbm [resolvable:$true] %s2309
      %2312 = dma.vmem_to_hbm [thread:$0]  %s2308, 128, %s2310, [#allocation4]
    $region53: #{tpu_custom_call.1} parent=1 // pred_fallthru
      _
    // Predicated region
    $region54: #{tpu_custom_call.1} parent=1 // pred_check
      _
    $region55: #{tpu_custom_call.1} parent=1 // pred_check_branch
      %2314 = sbr.rel (0) target = $region57
    $region56: #{tpu_custom_call.1} parent=1 // pred_region
      %2316 = dma.done [#allocation4], 128
    $region57: #{tpu_custom_call.1} parent=1 // pred_fallthru
      _
    %2317 = vsyncpa [#allocation3], 1
    %2318 = vsyncpa [#allocation6], 1
    %2319 = vsyncpa [#allocation9], 1
    %2320 = vsyncpa [#allocation12], 1
    %2321 = vsyncpa [#allocation4], 1

</llo_original>
